<compile_context>
chip_gen: v6e
topology: v6e:2x2x1
jax: 0.10.0
libtpu: 0.0.40
codegen_flags: <defaults>
</compile_context>

<pallas_src>
import functools

import numpy as np
import jax
import jax.numpy as jnp
from jax.experimental import pallas as pl
from jax.experimental.pallas import tpu as pltpu


def _round_up(x, m):
    return ((x + m - 1) // m) * m


def _fused_cnn_kernel(*refs, n_layers, layer_cfgs):
    """Runs the whole Conv+bias+ReLU chain for ONE image, entirely in VMEM.

    refs = (x_ref, [w_ref, b_ref, g_ref] * n_layers, o_ref)
      x_ref : (C0_p, width_0)        bf16  padded, flattened layer-0 input
      w_ref : (Cout_p, k*k*Cin_p)    bf16  tap-folded weight matrix
      b_ref : (Cout_p, 1)            f32   bias column (broadcast over lanes)
      g_ref : (Hp*Wp, width_next)    f32   0/1 remap: stride-1 conv output ->
                                           next layer's padded flat input (or
                                           the final Ho*Wo layout on the last
                                           layer).  Handles crop + stride +
                                           zero-padding in one matmul.
      o_ref : (Cout_last_p, Ho*Wo)   f32   final output for this image
    """
    x_ref = refs[0]
    o_ref = refs[-1]

    act = x_ref[...]                                    # (Cin_p, width) bf16
    for l in range(n_layers):
        w_ref = refs[1 + 3 * l]
        b_ref = refs[2 + 3 * l]
        g_ref = refs[3 + 3 * l]
        k, wp, tm = layer_cfgs[l]

        # Implicit im2col with the taps folded into the contraction dim.
        # Cin_p == 16 keeps every tap block a full packed bf16 sublane group,
        # so the concat is a plain vreg stack.
        taps = []
        for dh in range(k):
            for dw in range(k):
                off = dh * wp + dw                      # static tap offset
                taps.append(act[:, off:off + tm])
        patch = jnp.concatenate(taps, axis=0)           # (k*k*Cin_p, tm) bf16

        # One MXU matmul per layer (K = k*k*Cin_p), f32 accumulation.
        conv = jnp.dot(w_ref[...], patch,
                       preferred_element_type=jnp.float32)  # (Cout_p, tm) f32

        # f32 bias + ReLU epilogue.
        acts = jnp.maximum(conv + b_ref[...], 0.0)

        # Crop garbage stride-1 positions, apply the conv stride, and shift
        # into the next layer's zero-padded flat buffer -- one exact matmul.
        mapped = jnp.dot(acts, g_ref[...],
                         preferred_element_type=jnp.float32)

        if l == n_layers - 1:
            o_ref[...] = mapped.astype(o_ref.dtype)      # only true outputs hit HBM
        else:
            act = mapped.astype(jnp.bfloat16)            # bf16 VMEM intermediate


def fused_cnn_forward(x, w_mats, b_cols, kernel_sizes, strides, paddings,
                      channels):
    """x: (N, C0, H, W) f32 NCHW -> (N, C_last, Ho, Wo) f32, all layers fused."""
    N, C0, H, W = x.shape
    n_layers = len(kernel_sizes)
    c0_p = w_mats[0].shape[1] // (kernel_sizes[0] * kernel_sizes[0])

    # ---- static per-layer geometry ---------------------------------------
    geoms = []
    h, w_sp = H, W
    for l in range(n_layers):
        k, s, p = kernel_sizes[l], strides[l], paddings[l]
        hp, wp = h + 2 * p, w_sp + 2 * p
        ho, wo = (hp - k) // s + 1, (wp - k) // s + 1
        tm = hp * wp                               # stride-1 flat output count
        max_off = (k - 1) * wp + (k - 1)           # largest in-kernel tap offset
        in_width = _round_up(tm + max_off, 128)    # lane-aligned input buffer
        geoms.append(dict(k=k, s=s, p=p, hp=hp, wp=wp, ho=ho, wo=wo,
                          tm=tm, in_width=in_width))
        h, w_sp = ho, wo

    # ---- constant 0/1 remap matrices (trace-time numpy constants) ---------
    g_mats = []
    for l in range(n_layers):
        g = geoms[l]
        last = l == n_layers - 1
        if last:
            out_width = g["ho"] * g["wo"]
        else:
            out_width = geoms[l + 1]["in_width"]
            p_next, wp_next = geoms[l + 1]["p"], geoms[l + 1]["wp"]
        G = np.zeros((g["tm"], out_width), np.float32)
        for ho in range(g["ho"]):
            for wo in range(g["wo"]):
                src = (ho * g["s"]) * g["wp"] + wo * g["s"]
                dst = (ho * g["wo"] + wo) if last else \
                      ((ho + p_next) * wp_next + (wo + p_next))
                G[src, dst] = 1.0
        g_mats.append(jnp.asarray(G))

    # ---- one-time input prep: pad channels+spatial, flatten, cast bf16 ----
    g0 = geoms[0]
    p0 = g0["p"]
    xp = jnp.pad(x, ((0, 0), (0, c0_p - C0), (p0, p0), (p0, p0)))
    xf = xp.reshape(N, c0_p, g0["tm"])
    xf = jnp.pad(xf, ((0, 0), (0, 0), (0, g0["in_width"] - g0["tm"])))
    xf = xf.astype(jnp.bfloat16)

    # ---- pallas_call plumbing ---------------------------------------------
    in_specs = [pl.BlockSpec((None, c0_p, g0["in_width"]), lambda i: (i, 0, 0))]
    inputs = [xf]
    for l in range(n_layers):
        for arr in (w_mats[l], b_cols[l], g_mats[l]):
            # Constant blocks: same block index every step -> fetched once.
            in_specs.append(pl.BlockSpec(arr.shape, lambda i: (0, 0)))
            inputs.append(arr)

    c_last = channels[-1]
    c_last_p = w_mats[-1].shape[0]
    ho_l, wo_l = geoms[-1]["ho"], geoms[-1]["wo"]
    out_shape = jax.ShapeDtypeStruct((N, c_last_p, ho_l * wo_l), jnp.float32)
    out_spec = pl.BlockSpec((None, c_last_p, ho_l * wo_l), lambda i: (i, 0, 0))

    # Advisory cost estimate so XLA schedules the tiny glue around the call.
    flops = 0
    for l in range(n_layers):
        cout_p, kkc = w_mats[l].shape
        flops += 2 * cout_p * kkc * geoms[l]["tm"]
        flops += 2 * cout_p * geoms[l]["tm"] * g_mats[l].shape[1]
    flops *= N
    bytes_accessed = (xf.size * 2
                      + sum(int(a.size) * a.dtype.itemsize for a in inputs[1:])
                      + N * c_last_p * ho_l * wo_l * 4)

    kernel = functools.partial(
        _fused_cnn_kernel, n_layers=n_layers,
        layer_cfgs=tuple((geoms[l]["k"], geoms[l]["wp"], geoms[l]["tm"])
                         for l in range(n_layers)))

    out = pl.pallas_call(
        kernel,
        out_shape=out_shape,
        grid_spec=pltpu.PrefetchScalarGridSpec(
            num_scalar_prefetch=0,
            grid=(N,),
            in_specs=in_specs,
            out_specs=out_spec,
        ),
        compiler_params=pltpu.CompilerParams(
            dimension_semantics=("parallel",),        # batch across TCs (v7x)
            vmem_limit_bytes=32 * 1024 * 1024),        # explicit, safe on all gens
        cost_estimate=pl.CostEstimate(flops=int(flops), transcendentals=0,
                                      bytes_accessed=int(bytes_accessed)),
    )(*inputs)

    # Tiny final reshape in XLA: crop channel padding, unflatten spatial.
    out = out[:, :c_last, :].reshape(N, c_last, ho_l, wo_l)
    return out


class CNNPallas:
    """JAX/Pallas re-implementation of the `cnn` module's implied forward:
    n_layers x (Conv2d -> ReLU), PyTorch cross-correlation semantics."""

    def __init__(self, n_layers, kernel_sizes, strides, paddings,
                 output_paddings, channels, key):
        self.n_layers = n_layers
        self.kernel_sizes = list(kernel_sizes)
        self.strides = list(strides)
        self.paddings = list(paddings)
        # TODO(synk): output_paddings (ConvTranspose2d decoder) unimplemented.
        self.output_paddings = list(output_paddings)
        self.channels = list(channels)

        self.raw_params = []   # PyTorch-layout (w, b), used by the reference
        self.w_mats = []       # tap-folded (Cout_p, k*k*Cin_p) bf16
        self.b_cols = []       # (Cout_p, 1) f32
        for l in range(n_layers):
            c_in, c_out = channels[l], channels[l + 1]
            k = kernel_sizes[l]
            key, wk, bk = jax.random.split(key, 3)
            fan_in = c_in * k * k
            w = jax.random.normal(wk, (c_out, c_in, k, k), jnp.float32)
            w = w * (1.0 / jnp.sqrt(fan_in))
            b = jax.random.normal(bk, (c_out,), jnp.float32) * 0.01
            self.raw_params.append((w, b))

            c_in_p = _round_up(c_in, 16)     # bf16 packs 16 sublanes per vreg
            c_out_p = _round_up(c_out, 16)
            wt = jnp.transpose(w, (0, 2, 3, 1))              # (Cout, k, k, Cin)
            wt = jnp.pad(wt, ((0, c_out_p - c_out), (0, 0), (0, 0),
                              (0, c_in_p - c_in)))
            self.w_mats.append(
                wt.reshape(c_out_p, k * k * c_in_p).astype(jnp.bfloat16))
            self.b_cols.append(
                jnp.pad(b, (0, c_out_p - c_out)).reshape(c_out_p, 1)
                .astype(jnp.float32))

    def __call__(self, x):
        return fused_cnn_forward(x, self.w_mats, self.b_cols,
                                 self.kernel_sizes, self.strides,
                                 self.paddings, self.channels)


def _reference_forward(x, raw_params, strides, paddings):
    """Plain-JAX f32 reference (PyTorch Conv2d cross-correlation + ReLU)."""
    y = x
    for (w, b), s, p in zip(raw_params, strides, paddings):
        y = jax.lax.conv_general_dilated(
            y, w, window_strides=(s, s), padding=[(p, p), (p, p)],
            dimension_numbers=("NCHW", "OIHW", "NCHW"))
        y = jnp.maximum(y + b.reshape(1, -1, 1, 1), 0.0)
    return y


if __name__ == "__main__":
    key = jax.random.PRNGKey(0)
    key, xk = jax.random.split(key)

    # Small shapes consistent with the module: batch=2, channels=4, spatial=16.
    n_layers = 2
    kernel_sizes = [3, 3]
    strides = [1, 2]
    paddings = [1, 1]
    output_paddings = [0, 0]
    channels = [4, 8, 16]   # C_in=4 -> 8 -> 16

    model = CNNPallas(n_layers, kernel_sizes, strides, paddings,
                      output_paddings, channels, key)

    x = jax.random.normal(xk, (2, 4, 16, 16), jnp.float32)  # NCHW
    fwd = jax.jit(model.__call__)
    y = jax.block_until_ready(fwd(x))
    assert y.shape == (2, 16, 8, 8), y.shape
    assert bool(jnp.all(jnp.isfinite(y)))

    # bf16-operand / f32-accumulate kernel vs f32 reference: loose tolerance.
    y_ref = _reference_forward(x, model.raw_params, strides, paddings)
    max_err = float(jnp.max(jnp.abs(y - y_ref)))
    assert max_err < 0.25, f"max abs error vs reference: {max_err}"

    print("KERNEL_OK")
</pallas_src>

<mosaic_0001>
module attributes {stable_mosaic.version = 11 : i64} {
  func.func @_fused_cnn_kernel(%arg0: i32, %arg1: memref<1x16x384xbf16, #tpu.memory_space<vmem>>, %arg2: memref<16x144xbf16, #tpu.memory_space<vmem>>, %arg3: memref<16x1xf32, #tpu.memory_space<vmem>>, %arg4: memref<324x384xf32, #tpu.memory_space<vmem>>, %arg5: memref<16x144xbf16, #tpu.memory_space<vmem>>, %arg6: memref<16x1xf32, #tpu.memory_space<vmem>>, %arg7: memref<324x64xf32, #tpu.memory_space<vmem>>, %arg8: memref<1x16x64xf32, #tpu.memory_space<vmem>>) attributes {dimension_semantics = [#tpu.dimension_semantics<parallel>], iteration_bounds = array<i64: 2>, scalar_prefetch = 0 : i64, scratch_operands = 0 : i64, tpu.core_type = #tpu.core_type<tc>, window_params = [{transform_indices = @transform_0, window_bounds = array<i64: 1, 16, 384>}, {pipeline_mode = #tpu.pipeline_mode<synchronous>, transform_indices = @transform_1, window_bounds = array<i64: 16, 144>}, {pipeline_mode = #tpu.pipeline_mode<synchronous>, transform_indices = @transform_2, window_bounds = array<i64: 16, 1>}, {pipeline_mode = #tpu.pipeline_mode<synchronous>, transform_indices = @transform_3, window_bounds = array<i64: 324, 384>}, {pipeline_mode = #tpu.pipeline_mode<synchronous>, transform_indices = @transform_4, window_bounds = array<i64: 16, 144>}, {pipeline_mode = #tpu.pipeline_mode<synchronous>, transform_indices = @transform_5, window_bounds = array<i64: 16, 1>}, {pipeline_mode = #tpu.pipeline_mode<synchronous>, transform_indices = @transform_6, window_bounds = array<i64: 324, 64>}, {transform_indices = @transform_7, window_bounds = array<i64: 1, 16, 64>}]} {
    %c0 = arith.constant 0 : index
    %c0_0 = arith.constant 0 : index
    %c0_1 = arith.constant 0 : index
    %0 = vector.load %arg1[%c0, %c0_0, %c0_1] : memref<1x16x384xbf16, #tpu.memory_space<vmem>>, vector<1x16x384xbf16>
    %1 = vector.shape_cast %0 : vector<1x16x384xbf16> to vector<16x384xbf16>
    %2 = vector.extract_strided_slice %1 {offsets = [0, 0], sizes = [16, 324], strides = [1, 1]} : vector<16x384xbf16> to vector<16x324xbf16>
    %3 = vector.extract_strided_slice %1 {offsets = [0, 1], sizes = [16, 324], strides = [1, 1]} : vector<16x384xbf16> to vector<16x324xbf16>
    %4 = vector.extract_strided_slice %1 {offsets = [0, 2], sizes = [16, 324], strides = [1, 1]} : vector<16x384xbf16> to vector<16x324xbf16>
    %5 = vector.extract_strided_slice %1 {offsets = [0, 18], sizes = [16, 324], strides = [1, 1]} : vector<16x384xbf16> to vector<16x324xbf16>
    %6 = vector.extract_strided_slice %1 {offsets = [0, 19], sizes = [16, 324], strides = [1, 1]} : vector<16x384xbf16> to vector<16x324xbf16>
    %7 = vector.extract_strided_slice %1 {offsets = [0, 20], sizes = [16, 324], strides = [1, 1]} : vector<16x384xbf16> to vector<16x324xbf16>
    %8 = vector.extract_strided_slice %1 {offsets = [0, 36], sizes = [16, 324], strides = [1, 1]} : vector<16x384xbf16> to vector<16x324xbf16>
    %9 = vector.extract_strided_slice %1 {offsets = [0, 37], sizes = [16, 324], strides = [1, 1]} : vector<16x384xbf16> to vector<16x324xbf16>
    %10 = vector.extract_strided_slice %1 {offsets = [0, 38], sizes = [16, 324], strides = [1, 1]} : vector<16x384xbf16> to vector<16x324xbf16>
    %11 = tpu.concatenate %2, %3, %4, %5, %6, %7, %8, %9, %10 in 0 : vector<16x324xbf16>, vector<16x324xbf16>, vector<16x324xbf16>, vector<16x324xbf16>, vector<16x324xbf16>, vector<16x324xbf16>, vector<16x324xbf16>, vector<16x324xbf16>, vector<16x324xbf16> -> vector<144x324xbf16>
    %c0_2 = arith.constant 0 : index
    %c0_3 = arith.constant 0 : index
    %12 = vector.load %arg2[%c0_2, %c0_3] : memref<16x144xbf16, #tpu.memory_space<vmem>>, vector<16x144xbf16>
    %cst = arith.constant dense<0.000000e+00> : vector<16x324xf32>
    %13 = tpu.matmul %12, %11, %cst {dimension_numbers = #tpu.dot_dimension_numbers<[1], [0], [0], [1], [0, 0, 1, 1], [], []>} : vector<16x144xbf16>, vector<144x324xbf16>, vector<16x324xf32> -> vector<16x324xf32>
    %c0_4 = arith.constant 0 : index
    %c0_5 = arith.constant 0 : index
    %14 = vector.load %arg3[%c0_4, %c0_5] : memref<16x1xf32, #tpu.memory_space<vmem>>, vector<16x1xf32>
    %15 = vector.broadcast %14 : vector<16x1xf32> to vector<16x324xf32>
    %16 = arith.addf %13, %15 : vector<16x324xf32>
    %cst_6 = arith.constant 0.000000e+00 : f32
    %17 = vector.broadcast %cst_6 : f32 to vector<16x324xf32>
    %18 = arith.maximumf %16, %17 : vector<16x324xf32>
    %c0_7 = arith.constant 0 : index
    %c0_8 = arith.constant 0 : index
    %19 = vector.load %arg4[%c0_7, %c0_8] : memref<324x384xf32, #tpu.memory_space<vmem>>, vector<324x384xf32>
    %cst_9 = arith.constant dense<0.000000e+00> : vector<16x384xf32>
    %20 = tpu.matmul %18, %19, %cst_9 {dimension_numbers = #tpu.dot_dimension_numbers<[1], [0], [0], [1], [0, 0, 1, 1], [], []>} : vector<16x324xf32>, vector<324x384xf32>, vector<16x384xf32> -> vector<16x384xf32>
    %21 = arith.truncf %20 : vector<16x384xf32> to vector<16x384xbf16>
    %22 = vector.extract_strided_slice %21 {offsets = [0, 0], sizes = [16, 324], strides = [1, 1]} : vector<16x384xbf16> to vector<16x324xbf16>
    %23 = vector.extract_strided_slice %21 {offsets = [0, 1], sizes = [16, 324], strides = [1, 1]} : vector<16x384xbf16> to vector<16x324xbf16>
    %24 = vector.extract_strided_slice %21 {offsets = [0, 2], sizes = [16, 324], strides = [1, 1]} : vector<16x384xbf16> to vector<16x324xbf16>
    %25 = vector.extract_strided_slice %21 {offsets = [0, 18], sizes = [16, 324], strides = [1, 1]} : vector<16x384xbf16> to vector<16x324xbf16>
    %26 = vector.extract_strided_slice %21 {offsets = [0, 19], sizes = [16, 324], strides = [1, 1]} : vector<16x384xbf16> to vector<16x324xbf16>
    %27 = vector.extract_strided_slice %21 {offsets = [0, 20], sizes = [16, 324], strides = [1, 1]} : vector<16x384xbf16> to vector<16x324xbf16>
    %28 = vector.extract_strided_slice %21 {offsets = [0, 36], sizes = [16, 324], strides = [1, 1]} : vector<16x384xbf16> to vector<16x324xbf16>
    %29 = vector.extract_strided_slice %21 {offsets = [0, 37], sizes = [16, 324], strides = [1, 1]} : vector<16x384xbf16> to vector<16x324xbf16>
    %30 = vector.extract_strided_slice %21 {offsets = [0, 38], sizes = [16, 324], strides = [1, 1]} : vector<16x384xbf16> to vector<16x324xbf16>
    %31 = tpu.concatenate %22, %23, %24, %25, %26, %27, %28, %29, %30 in 0 : vector<16x324xbf16>, vector<16x324xbf16>, vector<16x324xbf16>, vector<16x324xbf16>, vector<16x324xbf16>, vector<16x324xbf16>, vector<16x324xbf16>, vector<16x324xbf16>, vector<16x324xbf16> -> vector<144x324xbf16>
    %c0_10 = arith.constant 0 : index
    %c0_11 = arith.constant 0 : index
    %32 = vector.load %arg5[%c0_10, %c0_11] : memref<16x144xbf16, #tpu.memory_space<vmem>>, vector<16x144xbf16>
    %cst_12 = arith.constant dense<0.000000e+00> : vector<16x324xf32>
    %33 = tpu.matmul %32, %31, %cst_12 {dimension_numbers = #tpu.dot_dimension_numbers<[1], [0], [0], [1], [0, 0, 1, 1], [], []>} : vector<16x144xbf16>, vector<144x324xbf16>, vector<16x324xf32> -> vector<16x324xf32>
    %c0_13 = arith.constant 0 : index
    %c0_14 = arith.constant 0 : index
    %34 = vector.load %arg6[%c0_13, %c0_14] : memref<16x1xf32, #tpu.memory_space<vmem>>, vector<16x1xf32>
    %35 = vector.broadcast %34 : vector<16x1xf32> to vector<16x324xf32>
    %36 = arith.addf %33, %35 : vector<16x324xf32>
    %cst_15 = arith.constant 0.000000e+00 : f32
    %37 = vector.broadcast %cst_15 : f32 to vector<16x324xf32>
    %38 = arith.maximumf %36, %37 : vector<16x324xf32>
    %c0_16 = arith.constant 0 : index
    %c0_17 = arith.constant 0 : index
    %39 = vector.load %arg7[%c0_16, %c0_17] : memref<324x64xf32, #tpu.memory_space<vmem>>, vector<324x64xf32>
    %cst_18 = arith.constant dense<0.000000e+00> : vector<16x64xf32>
    %40 = tpu.matmul %38, %39, %cst_18 {dimension_numbers = #tpu.dot_dimension_numbers<[1], [0], [0], [1], [0, 0, 1, 1], [], []>} : vector<16x324xf32>, vector<324x64xf32>, vector<16x64xf32> -> vector<16x64xf32>
    %c0_19 = arith.constant 0 : index
    %c0_20 = arith.constant 0 : index
    %c0_21 = arith.constant 0 : index
    %41 = vector.load %arg8[%c0_19, %c0_20, %c0_21] : memref<1x16x64xf32, #tpu.memory_space<vmem>>, vector<1x16x64xf32>
    %42 = vector.shape_cast %41 : vector<1x16x64xf32> to vector<16x64xf32>
    %43 = vector.shape_cast %40 : vector<16x64xf32> to vector<1x16x64xf32>
    tpu.vector_store %arg8[%c0_19, %c0_20, %c0_21], %43 {strides = array<i32>} : memref<1x16x64xf32, #tpu.memory_space<vmem>>, vector<1x16x64xf32>,
    return
  }
  func.func @transform_0(%arg0: i32) -> (i32, i32, i32) {
    %c0_i32 = arith.constant 0 : i32
    %c0_i32_0 = arith.constant 0 : i32
    %c0_i32_1 = arith.constant 0 : i32
    return %arg0, %c0_i32, %c0_i32_0 : i32, i32, i32
  }
  func.func @transform_1(%arg0: i32) -> (i32, i32) {
    %c0_i32 = arith.constant 0 : i32
    %c0_i32_0 = arith.constant 0 : i32
    %c0_i32_1 = arith.constant 0 : i32
    return %c0_i32, %c0_i32_0 : i32, i32
  }
  func.func @transform_2(%arg0: i32) -> (i32, i32) {
    %c0_i32 = arith.constant 0 : i32
    %c0_i32_0 = arith.constant 0 : i32
    %c0_i32_1 = arith.constant 0 : i32
    return %c0_i32, %c0_i32_0 : i32, i32
  }
  func.func @transform_3(%arg0: i32) -> (i32, i32) {
    %c0_i32 = arith.constant 0 : i32
    %c0_i32_0 = arith.constant 0 : i32
    %c0_i32_1 = arith.constant 0 : i32
    return %c0_i32, %c0_i32_0 : i32, i32
  }
  func.func @transform_4(%arg0: i32) -> (i32, i32) {
    %c0_i32 = arith.constant 0 : i32
    %c0_i32_0 = arith.constant 0 : i32
    %c0_i32_1 = arith.constant 0 : i32
    return %c0_i32, %c0_i32_0 : i32, i32
  }
  func.func @transform_5(%arg0: i32) -> (i32, i32) {
    %c0_i32 = arith.constant 0 : i32
    %c0_i32_0 = arith.constant 0 : i32
    %c0_i32_1 = arith.constant 0 : i32
    return %c0_i32, %c0_i32_0 : i32, i32
  }
  func.func @transform_6(%arg0: i32) -> (i32, i32) {
    %c0_i32 = arith.constant 0 : i32
    %c0_i32_0 = arith.constant 0 : i32
    %c0_i32_1 = arith.constant 0 : i32
    return %c0_i32, %c0_i32_0 : i32, i32
  }
  func.func @transform_7(%arg0: i32) -> (i32, i32, i32) {
    %c0_i32 = arith.constant 0 : i32
    %c0_i32_0 = arith.constant 0 : i32
    %c0_i32_1 = arith.constant 0 : i32
    return %arg0, %c0_i32, %c0_i32_0 : i32, i32, i32
  }
}

</mosaic_0001>

<llo_original>
// kernel: a_call__.1
$region0: #{a_call__.1}
  #allocation0 [shape = 'u32[]', space=smem, size = 0x4, offset = 0x4, fixed_abs, tag = 'smem constant byte address 0x4 - core index']
  #allocation1 [shape = 'u32[144,128]{1,0:T(1,128)}', space=vmem, size = 0x12000, scoped, tag = 'internal scratch']
  %s0 = inlined_call_operand.vmem [shape: bf16[2,16,384], index: 0, kind: input, shape index: {}]
  %s1 = inlined_call_operand.vmem [shape: bf16[16,144], index: 1, kind: input, shape index: {}]
  %s2 = inlined_call_operand.vmem [shape: f32[16,1], index: 2, kind: input, shape index: {}]
  %s3 = inlined_call_operand.vmem [shape: f32[324,384], index: 3, kind: input, shape index: {}]
  %s4 = inlined_call_operand.vmem [shape: bf16[16,144], index: 4, kind: input, shape index: {}]
  %s5 = inlined_call_operand.vmem [shape: f32[16,1], index: 5, kind: input, shape index: {}]
  %s6 = inlined_call_operand.hbm [shape: f32[324,64], index: 6, kind: input, shape index: {}]
  %s7 = inlined_call_operand.vmem [shape: f32[2,16,64], index: 7, kind: output, shape index: {}]
  %s8 = sld [smem:[#allocation0]]
  $region65: #{a_call__.1} parent=0
    _
  %s10 = ssub.s32 1, %s8
  %s11 = scalar_select 0, %s10, %s8
  $region1: #{a_call__.1} parent=0
    #allocation2 [shape = 'u8[167936]{0}', space=vmem, size = 0x29000, scoped, tag = 'input window, operand 6, single buffered']
    #allocation3 [shape = 's32[2]{0}', space=sflag, size = 0x8, scoped, tag = 'scoped memory for a_call__.1']
    %12 = vsyncpa [#allocation3], 0
    loop: start=0, step=1, limit=4
    $region2: #{a_call__.1} parent=1 // loop_pre_header
      _
    $region3: #{a_call__.1} parent=1 // loop_header
      %s14 = sphi 0, %s18
      %p15 = scmp.ge.s32.totalorder %s14, 4
      %s24 = sphi 0, %s26
      %s27 = sphi 0, %s24
      %s28 = sphi 0, %s27
      %s44 = sphi 0, %s28
      %s48 = sphi 0, %s48
      %s50 = sphi 0, %s48
      %s51 = sphi 0, %s50
      %s65 = sphi 0, %s51
      %s69 = sphi 0, %s69
      %s71 = sphi 0, %s69
      %s72 = sphi 0, %s71
      %s86 = sphi 0, %s72
      %s90 = sphi 0, %s90
      %s92 = sphi 0, %s90
      %s93 = sphi 0, %s92
      %s107 = sphi 0, %s93
      %s111 = sphi 0, %s111
      %s113 = sphi 0, %s111
      %s114 = sphi 0, %s113
      %s128 = sphi 0, %s114
      %s132 = sphi 0, %s132
      %s134 = sphi 0, %s132
      %s135 = sphi 0, %s134
      %s149 = sphi 0, %s135
      %s153 = sphi 0, %s153
      %s155 = sphi 0, %s153
      %s156 = sphi 0, %s155
      %s170 = sphi 0, %s156
      %s176 = sphi 0, %s178
      %s179 = sphi 0, %s176
      %s180 = sphi 0, %s179
      %s196 = sphi 0, %s180
    $region4: #{a_call__.1} parent=1 // loop_header_branch
      %17 = sbr.rel (%p15) target = $region8
    $region5: #{a_call__.1} parent=1 // loop_body
      %s19 = ssub.s32 %s14, 1
      %s20 = ssub.s32 %s14, 2
      %s21 = sadd.s32 %s14, 1
      %s22 = ssub.s32 %s14, %s21
      %p23 = scmp.eq.s32.totalorder %s22, 0
      %s25 = sadd.s32 %s24, 1
      %s26 = scalar_select %p23, %s24, %s25
      %p29 = pneg %p23
      %p30 = scmp.eq.s32.totalorder %s14, 1
      %p31 = por %p29, %p30
      %p32 = scmp.ne.s32.totalorder %s24, %s27
      %p33 = scmp.eq.s32.totalorder %s14, 0
      %p34 = por %p32, %p33
      %p35 = scmp.ne.s32.totalorder %s24, %s27
      %p36 = scmp.eq.s32.totalorder %s19, 1
      %p37 = por %p35, %p36
      %p38 = scmp.ne.s32.totalorder %s27, %s28
      %p39 = scmp.eq.s32.totalorder %s19, 0
      %p40 = por %p38, %p39
      %p41 = scmp.ne.s32.totalorder %s27, %s28
      %p42 = scmp.eq.s32.totalorder %s20, 1
      %p43 = por %p41, %p42
      %p45 = scmp.ne.s32.totalorder %s28, %s44
      %p46 = scmp.eq.s32.totalorder %s20, 0
      %p47 = por %p45, %p46
      %s49 = sadd.s32 %s48, 1
      %p52 = scmp.eq.s32.totalorder %s14, 1
      %p53 = scmp.ne.s32.totalorder %s48, %s50
      %p54 = scmp.eq.s32.totalorder %s14, 0
      %p55 = por %p53, %p54
      %p56 = scmp.ne.s32.totalorder %s48, %s50
      %p57 = scmp.eq.s32.totalorder %s19, 1
      %p58 = por %p56, %p57
      %p59 = scmp.ne.s32.totalorder %s50, %s51
      %p60 = scmp.eq.s32.totalorder %s19, 0
      %p61 = por %p59, %p60
      %p62 = scmp.ne.s32.totalorder %s50, %s51
      %p63 = scmp.eq.s32.totalorder %s20, 1
      %p64 = por %p62, %p63
      %p66 = scmp.ne.s32.totalorder %s51, %s65
      %p67 = scmp.eq.s32.totalorder %s20, 0
      %p68 = por %p66, %p67
      %s70 = sadd.s32 %s69, 1
      %p73 = scmp.eq.s32.totalorder %s14, 1
      %p74 = scmp.ne.s32.totalorder %s69, %s71
      %p75 = scmp.eq.s32.totalorder %s14, 0
      %p76 = por %p74, %p75
      %p77 = scmp.ne.s32.totalorder %s69, %s71
      %p78 = scmp.eq.s32.totalorder %s19, 1
      %p79 = por %p77, %p78
      %p80 = scmp.ne.s32.totalorder %s71, %s72
      %p81 = scmp.eq.s32.totalorder %s19, 0
      %p82 = por %p80, %p81
      %p83 = scmp.ne.s32.totalorder %s71, %s72
      %p84 = scmp.eq.s32.totalorder %s20, 1
      %p85 = por %p83, %p84
      %p87 = scmp.ne.s32.totalorder %s72, %s86
      %p88 = scmp.eq.s32.totalorder %s20, 0
      %p89 = por %p87, %p88
      %s91 = sadd.s32 %s90, 1
      %p94 = scmp.eq.s32.totalorder %s14, 1
      %p95 = scmp.ne.s32.totalorder %s90, %s92
      %p96 = scmp.eq.s32.totalorder %s14, 0
      %p97 = por %p95, %p96
      %p98 = scmp.ne.s32.totalorder %s90, %s92
      %p99 = scmp.eq.s32.totalorder %s19, 1
      %p100 = por %p98, %p99
      %p101 = scmp.ne.s32.totalorder %s92, %s93
      %p102 = scmp.eq.s32.totalorder %s19, 0
      %p103 = por %p101, %p102
      %p104 = scmp.ne.s32.totalorder %s92, %s93
      %p105 = scmp.eq.s32.totalorder %s20, 1
      %p106 = por %p104, %p105
      %p108 = scmp.ne.s32.totalorder %s93, %s107
      %p109 = scmp.eq.s32.totalorder %s20, 0
      %p110 = por %p108, %p109
      %s112 = sadd.s32 %s111, 1
      %p115 = scmp.eq.s32.totalorder %s14, 1
      %p116 = scmp.ne.s32.totalorder %s111, %s113
      %p117 = scmp.eq.s32.totalorder %s14, 0
      %p118 = por %p116, %p117
      %p119 = scmp.ne.s32.totalorder %s111, %s113
      %p120 = scmp.eq.s32.totalorder %s19, 1
      %p121 = por %p119, %p120
      %p122 = scmp.ne.s32.totalorder %s113, %s114
      %p123 = scmp.eq.s32.totalorder %s19, 0
      %p124 = por %p122, %p123
      %p125 = scmp.ne.s32.totalorder %s113, %s114
      %p126 = scmp.eq.s32.totalorder %s20, 1
      %p127 = por %p125, %p126
      %p129 = scmp.ne.s32.totalorder %s114, %s128
      %p130 = scmp.eq.s32.totalorder %s20, 0
      %p131 = por %p129, %p130
      %s133 = sadd.s32 %s132, 1
      %p136 = scmp.eq.s32.totalorder %s14, 1
      %p137 = scmp.ne.s32.totalorder %s132, %s134
      %p138 = scmp.eq.s32.totalorder %s14, 0
      %p139 = por %p137, %p138
      %p140 = scmp.ne.s32.totalorder %s132, %s134
      %p141 = scmp.eq.s32.totalorder %s19, 1
      %p142 = por %p140, %p141
      %p143 = scmp.ne.s32.totalorder %s134, %s135
      %p144 = scmp.eq.s32.totalorder %s19, 0
      %p145 = por %p143, %p144
      %p146 = scmp.ne.s32.totalorder %s134, %s135
      %p147 = scmp.eq.s32.totalorder %s20, 1
      %p148 = por %p146, %p147
      %p150 = scmp.ne.s32.totalorder %s135, %s149
      %p151 = scmp.eq.s32.totalorder %s20, 0
      %p152 = por %p150, %p151
      %s154 = sadd.s32 %s153, 1
      %p157 = scmp.eq.s32.totalorder %s14, 1
      %p158 = scmp.ne.s32.totalorder %s153, %s155
      %p159 = scmp.eq.s32.totalorder %s14, 0
      %p160 = por %p158, %p159
      %p161 = scmp.ne.s32.totalorder %s153, %s155
      %p162 = scmp.eq.s32.totalorder %s19, 1
      %p163 = por %p161, %p162
      %p164 = scmp.ne.s32.totalorder %s155, %s156
      %p165 = scmp.eq.s32.totalorder %s19, 0
      %p166 = por %p164, %p165
      %p167 = scmp.ne.s32.totalorder %s155, %s156
      %p168 = scmp.eq.s32.totalorder %s20, 1
      %p169 = por %p167, %p168
      %p171 = scmp.ne.s32.totalorder %s156, %s170
      %p172 = scmp.eq.s32.totalorder %s20, 0
      %p173 = por %p171, %p172
      %s174 = ssub.s32 %s14, %s21
      %p175 = scmp.eq.s32.totalorder %s174, 0
      %s177 = sadd.s32 %s176, 1
      %s178 = scalar_select %p175, %s176, %s177
      %p181 = pneg %p175
      %p182 = scmp.eq.s32.totalorder %s14, 1
      %p183 = por %p181, %p182
      %p184 = scmp.ne.s32.totalorder %s176, %s179
      %p185 = scmp.eq.s32.totalorder %s14, 0
      %p186 = por %p184, %p185
      %p187 = scmp.ne.s32.totalorder %s176, %s179
      %p188 = scmp.eq.s32.totalorder %s19, 1
      %p189 = por %p187, %p188
      %p190 = scmp.ne.s32.totalorder %s179, %s180
      %p191 = scmp.eq.s32.totalorder %s19, 0
      %p192 = por %p190, %p191
      %p193 = scmp.ne.s32.totalorder %s179, %s180
      %p194 = scmp.eq.s32.totalorder %s20, 1
      %p195 = por %p193, %p194
      %p197 = scmp.ne.s32.totalorder %s180, %s196
      %p198 = scmp.eq.s32.totalorder %s20, 0
      %p199 = por %p197, %p198
      %p200 = scmp.le.s32.totalorder 1, %s14
      %p201 = scmp.lt.s32.totalorder %s14, 3
      %p202 = pnand %p200, %p201
      %p203 = pneg %p202
      // Predicated region
      $region9: #{a_call__.1} parent=5 // pred_check
        _
      $region10: #{a_call__.1} parent=5 // pred_check_branch
        %205 = sbr.rel (%p202) target = $region12
      $region11: #{a_call__.1} parent=5 // pred_region
        %s206 = ssub.s32 %s14, 1
        // Predicated region
        $region13: #{a_call__.1} parent=11 // pred_check
          %p207 = pneg %p61
        $region14: #{a_call__.1} parent=11 // pred_check_branch
          %209 = sbr.rel (%p207) target = $region16
        $region15: #{a_call__.1} parent=11 // pred_region
          _
        $region16: #{a_call__.1} parent=11 // pred_fallthru
          _
        // Predicated region
        $region17: #{a_call__.1} parent=11 // pred_check
          %p210 = pneg %p82
        $region18: #{a_call__.1} parent=11 // pred_check_branch
          %212 = sbr.rel (%p210) target = $region20
        $region19: #{a_call__.1} parent=11 // pred_region
          _
        $region20: #{a_call__.1} parent=11 // pred_fallthru
          _
        // Predicated region
        $region21: #{a_call__.1} parent=11 // pred_check
          %p213 = pneg %p103
        $region22: #{a_call__.1} parent=11 // pred_check_branch
          %215 = sbr.rel (%p213) target = $region24
        $region23: #{a_call__.1} parent=11 // pred_region
          _
        $region24: #{a_call__.1} parent=11 // pred_fallthru
          _
        // Predicated region
        $region25: #{a_call__.1} parent=11 // pred_check
          %p216 = pneg %p124
        $region26: #{a_call__.1} parent=11 // pred_check_branch
          %218 = sbr.rel (%p216) target = $region28
        $region27: #{a_call__.1} parent=11 // pred_region
          _
        $region28: #{a_call__.1} parent=11 // pred_fallthru
          _
        // Predicated region
        $region29: #{a_call__.1} parent=11 // pred_check
          %p219 = pneg %p145
        $region30: #{a_call__.1} parent=11 // pred_check_branch
          %221 = sbr.rel (%p219) target = $region32
        $region31: #{a_call__.1} parent=11 // pred_region
          _
        $region32: #{a_call__.1} parent=11 // pred_fallthru
          _
        // Predicated region
        $region33: #{a_call__.1} parent=11 // pred_check
          %p222 = pneg %p166
        $region34: #{a_call__.1} parent=11 // pred_check_branch
          %224 = sbr.rel (%p222) target = $region36
        $region35: #{a_call__.1} parent=11 // pred_region
          %s226 = ssub.s32 5248, 5248
          %227 = vsyncadd [#allocation3], %s226
          %s228 = sshll.u32 [#allocation2], 4
          %s229 = int_to_ptr.vmem [resolvable:$true] %s228
          %234 = dma.hbm_to_vmem [thread:$0]  %s6, 5248, %s229, [#allocation3], 128, 128, 8
        $region36: #{a_call__.1} parent=11 // pred_fallthru
          _
      $region12: #{a_call__.1} parent=5 // pred_fallthru
        _
      %p235 = scmp.lt.s32.totalorder %s14, 2
      // Predicated region
      $region37: #{a_call__.1} parent=5 // pred_check
        %p236 = pneg %p235
      $region38: #{a_call__.1} parent=5 // pred_check_branch
        %238 = sbr.rel (%p236) target = $region40
      $region39: #{a_call__.1} parent=5 // pred_region
        // Predicated region
        $region41: #{a_call__.1} parent=39 // pred_check
          %p239 = pneg %p34
        $region42: #{a_call__.1} parent=39 // pred_check_branch
          %241 = sbr.rel (%p239) target = $region44
        $region43: #{a_call__.1} parent=39 // pred_region
          %p242 = scmp.lt.s32.totalorder %s14, 1
          %s243 = scalar_select %p242, %s14, 1
          %s244 = smul.addr %s243, 6
          %s245 = smul.addr %s244, 4
          %s246 = scalar_lea.vmem %s0, %s245
        $region44: #{a_call__.1} parent=39 // pred_fallthru
          _
      $region40: #{a_call__.1} parent=5 // pred_fallthru
        _
      %p247 = scmp.le.s32.totalorder 1, %s14
      %p248 = scmp.lt.s32.totalorder %s14, 3
      %p249 = pnand %p247, %p248
      %p250 = pneg %p249
      // Predicated region
      $region45: #{a_call__.1} parent=5 // pred_check
        _
      $region46: #{a_call__.1} parent=5 // pred_check_branch
        %252 = sbr.rel (%p249) target = $region48
      $region47: #{a_call__.1} parent=5 // pred_region
        %s253 = ssub.s32 %s14, 1
        // Predicated region
        $region49: #{a_call__.1} parent=47 // pred_check
          %p254 = pneg %p166
        $region50: #{a_call__.1} parent=47 // pred_check_branch
          %256 = sbr.rel (%p254) target = $region52
        $region51: #{a_call__.1} parent=47 // pred_region
          %257 = dma.done [#allocation3], 5248
        $region52: #{a_call__.1} parent=47 // pred_fallthru
          _
        %p258 = scmp.lt.s32.totalorder %s19, 1
        %s259 = scalar_select %p258, %s19, 1
        %s260 = smul.addr %s259, 6
        %s261 = smul.addr %s260, 4
        %s262 = scalar_lea.vmem %s0, %s261
        %p263 = pneg %p40
        %p264 = pneg %p37
        %p265 = pneg %p61
        %p266 = pneg %p58
        %p267 = pneg %p82
        %p268 = pneg %p79
        %p269 = pneg %p103
        %p270 = pneg %p100
        %p271 = pneg %p124
        %p272 = pneg %p121
        %p273 = pneg %p145
        %p274 = pneg %p142
        %p275 = pneg %p166
        %p276 = pneg %p163
        %p277 = pneg %p192
        %p278 = pneg %p189
        %p279 = scmp.lt.s32.totalorder %s19, 1
        %s280 = scalar_select %p279, %s19, 1
        %s281 = smul.addr %s280, 2
        %s282 = smul.addr %s281, 8
        %s283 = scalar_lea.vmem %s7, %s282
        %p284 = scmp.lt.s32.totalorder %s19, 1
        %s285 = scalar_select %p284, %s19, 1
        %s286 = smul.addr %s285, 6
        %s287 = smul.addr %s286, 4
        %s288 = scalar_lea.vmem %s0, %s287
        %p289 = scmp.lt.s32.totalorder %s19, 1
        %s290 = scalar_select %p289, %s19, 1
        %s291 = smul.addr %s290, 2
        %s292 = smul.addr %s291, 8
        %s293 = scalar_lea.vmem %s7, %s292
        %v295 = vld [vmem:[%s288] sm:$0xff]
        %v296 = vld [vmem:[%s288 + $0x8] sm:$0xf]
        %v297 = vld [vmem:[%s288 + $0xc] sm:$0xff]
        %v298 = vld [vmem:[%s288 + $0x14] sm:$0xf]
        %v303 = vunpack.c.l.b16 %v295
        %v304 = vunpack.c.h.b16 %v295
        %v305 = vunpack.c.l.b16 %v296
        %v306 = vunpack.c.l.b16 %v297
        %v307 = vunpack.c.h.b16 %v297
        %v308 = vunpack.c.l.b16 %v298
        %v309 = vpack.c.b16 %v306, %v303
        %v310 = vpack.c.b16 %v307, %v304
        %v311 = vpack.c.b16 %v308, %v305
        %315 = vrot.lane.b32.xlu0 %v309, 127
        %v316 = vpop.permute.xlu0 %315
        %317 = vrot.lane.b32.xlu0 %v310, 127
        %v318 = vpop.permute.xlu0 %317
        %319 = vrot.lane.b32.xlu0 %v311, 127
        %v320 = vpop.permute.xlu0 %319
        %vm321 = vcmask 1039360
        %v322 = vsel %vm321, %v316, %v318
        %v323 = vsel %vm321, %v318, %v320
        %327 = vrot.lane.b32.xlu0 %v309, 126
        %v328 = vpop.permute.xlu0 %327
        %329 = vrot.lane.b32.xlu0 %v310, 126
        %v330 = vpop.permute.xlu0 %329
        %331 = vrot.lane.b32.xlu0 %v311, 126
        %v332 = vpop.permute.xlu0 %331
        %vm333 = vcmask 1031168
        %v334 = vsel %vm333, %v328, %v330
        %v335 = vsel %vm333, %v330, %v332
        %339 = vrot.lane.b32.xlu0 %v309, 110
        %v340 = vpop.permute.xlu0 %339
        %341 = vrot.lane.b32.xlu0 %v310, 110
        %v342 = vpop.permute.xlu0 %341
        %343 = vrot.lane.b32.xlu0 %v311, 110
        %v344 = vpop.permute.xlu0 %343
        %vm345 = vcmask 900096
        %v346 = vsel %vm345, %v340, %v342
        %v347 = vsel %vm345, %v342, %v344
        %351 = vrot.lane.b32.xlu0 %v309, 109
        %v352 = vpop.permute.xlu0 %351
        %353 = vrot.lane.b32.xlu0 %v310, 109
        %v354 = vpop.permute.xlu0 %353
        %355 = vrot.lane.b32.xlu0 %v311, 109
        %v356 = vpop.permute.xlu0 %355
        %vm357 = vcmask 891904
        %v358 = vsel %vm357, %v352, %v354
        %v359 = vsel %vm357, %v354, %v356
        %363 = vrot.lane.b32.xlu0 %v309, 108
        %v364 = vpop.permute.xlu0 %363
        %365 = vrot.lane.b32.xlu0 %v310, 108
        %v366 = vpop.permute.xlu0 %365
        %367 = vrot.lane.b32.xlu0 %v311, 108
        %v368 = vpop.permute.xlu0 %367
        %vm369 = vcmask 883712
        %v370 = vsel %vm369, %v364, %v366
        %v371 = vsel %vm369, %v366, %v368
        %375 = vrot.lane.b32.xlu0 %v309, 92
        %v376 = vpop.permute.xlu0 %375
        %377 = vrot.lane.b32.xlu0 %v310, 92
        %v378 = vpop.permute.xlu0 %377
        %379 = vrot.lane.b32.xlu0 %v311, 92
        %v380 = vpop.permute.xlu0 %379
        %vm381 = vcmask 752640
        %v382 = vsel %vm381, %v376, %v378
        %v383 = vsel %vm381, %v378, %v380
        %387 = vrot.lane.b32.xlu0 %v309, 91
        %v388 = vpop.permute.xlu0 %387
        %389 = vrot.lane.b32.xlu0 %v310, 91
        %v390 = vpop.permute.xlu0 %389
        %391 = vrot.lane.b32.xlu0 %v311, 91
        %v392 = vpop.permute.xlu0 %391
        %vm393 = vcmask 744448
        %v394 = vsel %vm393, %v388, %v390
        %v395 = vsel %vm393, %v390, %v392
        %399 = vrot.lane.b32.xlu0 %v309, 90
        %v400 = vpop.permute.xlu0 %399
        %401 = vrot.lane.b32.xlu0 %v310, 90
        %v402 = vpop.permute.xlu0 %401
        %403 = vrot.lane.b32.xlu0 %v311, 90
        %v404 = vpop.permute.xlu0 %403
        %vm405 = vcmask 736256
        %v406 = vsel %vm405, %v400, %v402
        %v407 = vsel %vm405, %v402, %v404
        %v411 = vld [vmem:[%s1] sm:$0xff]
        %v412 = vld [vmem:[%s1 + $0x8] sm:$0xff]
        %v413 = vld [vmem:[%s2] sm:$0xff]
        %v414 = vld [vmem:[%s2 + $0x8] sm:$0xff]
        %416 = vset.pattern.permute.xlu0 0
        %417 = vperm.xlu0 %416, %v413
        %v418 = vpop.permute.xlu0 %417
        %421 = vset.pattern.permute.xlu0 0
        %422 = vperm.xlu0 %421, %v414
        %v423 = vpop.permute.xlu0 %422
        %v427 = vunpack.c.l.b16 %v411
        %v428 = vunpack.c.h.b16 %v411
        %v429 = vunpack.c.l.b16 %v412
        %v430 = vunpack.c.h.b16 %v412
        %v431 = vpack.c.b16 %v429, %v427
        %v432 = vpack.c.b16 %v430, %v428
        %vm434 = vcmask 130048
        %v436 = vsel %vm434, %v432, 0
        %438 = vmatprep.subr.bf16.mxu0 %v395
        %439 = vmatpush1.bf16.msra.mxu0 %v394
        %440 = vmatprep.subr.bf16.mxu0 %v383
        %441 = vmatpush1.bf16.msra.mxu0 %v382
        %442 = vmatprep.subr.bf16.mxu0 %v371
        %443 = vmatpush1.bf16.msra.mxu0 %v370
        %444 = vmatprep.subr.bf16.mxu0 %v359
        %445 = vmatpush1.bf16.msra.mxu0 %v358
        %446 = vmatprep.subr.bf16.mxu0 %v347
        %447 = vmatpush1.bf16.msra.mxu0 %v346
        %448 = vmatprep.subr.bf16.mxu0 %v335
        %449 = vmatpush1.bf16.msra.mxu0 %v334
        %450 = vmatprep.subr.bf16.mxu0 %v323
        %451 = vmatpush1.bf16.msra.mxu0 %v322
        %452 = vmatprep.subr.bf16.mxu0 %v310
        %453 = vmatpush1.bf16.msra.mxu0 %v309
        %454 = vmatprep.subr.bf16.mxu0 0
        %455 = vmatpush2.bf16.msra.mxu0 0
        %456 = vmatprep.subr.bf16.mxu0 0
        %457 = vmatpush2.bf16.msra.mxu0 0
        %458 = vmatprep.subr.bf16.mxu0 0
        %459 = vmatpush2.bf16.msra.mxu0 0
        %460 = vmatprep.subr.bf16.mxu0 0
        %461 = vmatpush2.bf16.msra.mxu0 0
        %462 = vmatprep.subr.bf16.mxu0 0
        %463 = vmatpush2.bf16.msra.mxu0 0
        %464 = vmatprep.subr.bf16.mxu0 0
        %465 = vmatpush2.bf16.msra.mxu0 0
        %466 = vmatprep.subr.bf16.mxu0 0
        %467 = vmatpush2.bf16.msra.mxu0 0
        %468 = vmatprep.subr.bf16.mxu0 %v407
        %469 = vmatpush2.bf16.msra.mxu0 %v406
        %470 = vmatprep.mubr.bf16.mxu0 %v436
        %471 = vmatmul.mubr.bf16.gmra.mxu0 %v431
        %v472 = vpop.f32.mrf.mxu0
        %v473 = vadd.f32 %v418, %v472
        %v474 = vpop.f32.mrf.mxu0
        %v475 = vadd.f32 %v418, %v474
        %v476 = vpop.f32.mrf.mxu0
        %v477 = vadd.f32 %v423, %v476
        %v478 = vpop.f32.mrf.mxu0
        %v479 = vadd.f32 %v423, %v478
        %480 = vdwg.mxu0
        %481 = vmatprep.subr.bf16.mxu0 0
        %482 = vmatpush1.bf16.msra.mxu0 %v392
        %483 = vmatprep.subr.bf16.mxu0 0
        %484 = vmatpush1.bf16.msra.mxu0 %v380
        %485 = vmatprep.subr.bf16.mxu0 0
        %486 = vmatpush1.bf16.msra.mxu0 %v368
        %487 = vmatprep.subr.bf16.mxu0 0
        %488 = vmatpush1.bf16.msra.mxu0 %v356
        %489 = vmatprep.subr.bf16.mxu0 0
        %490 = vmatpush1.bf16.msra.mxu0 %v344
        %491 = vmatprep.subr.bf16.mxu0 0
        %492 = vmatpush1.bf16.msra.mxu0 %v332
        %493 = vmatprep.subr.bf16.mxu0 0
        %494 = vmatpush1.bf16.msra.mxu0 %v320
        %495 = vmatprep.subr.bf16.mxu0 0
        %496 = vmatpush1.bf16.msra.mxu0 %v311
        %497 = vmatprep.subr.bf16.mxu0 0
        %498 = vmatpush2.bf16.msra.mxu0 0
        %499 = vmatprep.subr.bf16.mxu0 0
        %500 = vmatpush2.bf16.msra.mxu0 0
        %501 = vmatprep.subr.bf16.mxu0 0
        %502 = vmatpush2.bf16.msra.mxu0 0
        %503 = vmatprep.subr.bf16.mxu0 0
        %504 = vmatpush2.bf16.msra.mxu0 0
        %505 = vmatprep.subr.bf16.mxu0 0
        %506 = vmatpush2.bf16.msra.mxu0 0
        %507 = vmatprep.subr.bf16.mxu0 0
        %508 = vmatpush2.bf16.msra.mxu0 0
        %509 = vmatprep.subr.bf16.mxu0 0
        %510 = vmatpush2.bf16.msra.mxu0 0
        %511 = vmatprep.subr.bf16.mxu0 0
        %512 = vmatpush2.bf16.msra.mxu0 %v404
        %513 = vmatprep.mubr.bf16.mxu0 %v436
        %514 = vmatmul.mubr.bf16.gmra.mxu0 %v431
        %v515 = vpop.f32.mrf.mxu0
        %v516 = vadd.f32 %v418, %v515
        %v517 = vpop.f32.mrf.mxu0
        %v518 = vpop.f32.mrf.mxu0
        %v519 = vadd.f32 %v423, %v518
        %v520 = vpop.f32.mrf.mxu0
        %521 = vdwg.mxu0
        %v522 = vmax.f32 %v473, 0.0
        %v523 = vmax.f32 %v475, 0.0
        %v524 = vmax.f32 %v516, 0.0
        %v525 = vmax.f32 %v477, 0.0
        %v526 = vmax.f32 %v479, 0.0
        %v527 = vmax.f32 %v519, 0.0
        %v528 = vld [vmem:[%s3] sm:$0xff]
        %v529 = vld [vmem:[%s3 + $0x8] sm:$0xff]
        %v530 = vld [vmem:[%s3 + $0x10] sm:$0xff]
        %v531 = vld [vmem:[%s3 + $0x18] sm:$0xff]
        %v532 = vld [vmem:[%s3 + $0x20] sm:$0xff]
        %v533 = vld [vmem:[%s3 + $0x28] sm:$0xff]
        %v534 = vld [vmem:[%s3 + $0x30] sm:$0xff]
        %v535 = vld [vmem:[%s3 + $0x38] sm:$0xff]
        %v536 = vld [vmem:[%s3 + $0x40] sm:$0xff]
        %v537 = vld [vmem:[%s3 + $0x48] sm:$0xff]
        %v538 = vld [vmem:[%s3 + $0x50] sm:$0xff]
        %v539 = vld [vmem:[%s3 + $0x58] sm:$0xff]
        %v540 = vld [vmem:[%s3 + $0x60] sm:$0xff]
        %v541 = vld [vmem:[%s3 + $0x68] sm:$0xff]
        %v542 = vld [vmem:[%s3 + $0x70] sm:$0xff]
        %v543 = vld [vmem:[%s3 + $0x78] sm:$0xff]
        %v544 = vld [vmem:[%s3 + $0x80] sm:$0xff]
        %v545 = vld [vmem:[%s3 + $0x88] sm:$0xff]
        %v546 = vld [vmem:[%s3 + $0x90] sm:$0xff]
        %v547 = vld [vmem:[%s3 + $0x98] sm:$0xff]
        %v548 = vld [vmem:[%s3 + $0xa0] sm:$0xff]
        %v549 = vld [vmem:[%s3 + $0xa8] sm:$0xff]
        %v550 = vld [vmem:[%s3 + $0xb0] sm:$0xff]
        %v551 = vld [vmem:[%s3 + $0xb8] sm:$0xff]
        %v552 = vld [vmem:[%s3 + $0xc0] sm:$0xff]
        %v553 = vld [vmem:[%s3 + $0xc8] sm:$0xff]
        %v554 = vld [vmem:[%s3 + $0xd0] sm:$0xff]
        %v555 = vld [vmem:[%s3 + $0xd8] sm:$0xff]
        %v556 = vld [vmem:[%s3 + $0xe0] sm:$0xff]
        %v557 = vld [vmem:[%s3 + $0xe8] sm:$0xff]
        %v558 = vld [vmem:[%s3 + $0xf0] sm:$0xff]
        %v559 = vld [vmem:[%s3 + $0xf8] sm:$0xff]
        %v560 = vld [vmem:[%s3 + $0x100] sm:$0xff]
        %v561 = vld [vmem:[%s3 + $0x108] sm:$0xff]
        %v562 = vld [vmem:[%s3 + $0x110] sm:$0xff]
        %v563 = vld [vmem:[%s3 + $0x118] sm:$0xff]
        %v564 = vld [vmem:[%s3 + $0x120] sm:$0xff]
        %v565 = vld [vmem:[%s3 + $0x128] sm:$0xff]
        %v566 = vld [vmem:[%s3 + $0x130] sm:$0xff]
        %v567 = vld [vmem:[%s3 + $0x138] sm:$0xff]
        %v568 = vld [vmem:[%s3 + $0x140] sm:$0xff]
        %v569 = vld [vmem:[%s3 + $0x148] sm:$0xff]
        %v570 = vld [vmem:[%s3 + $0x150] sm:$0xff]
        %v571 = vld [vmem:[%s3 + $0x158] sm:$0xff]
        %v572 = vld [vmem:[%s3 + $0x160] sm:$0xff]
        %v573 = vld [vmem:[%s3 + $0x168] sm:$0xff]
        %v574 = vld [vmem:[%s3 + $0x170] sm:$0xff]
        %v575 = vld [vmem:[%s3 + $0x178] sm:$0xff]
        %v576 = vld [vmem:[%s3 + $0x180] sm:$0xff]
        %v577 = vld [vmem:[%s3 + $0x188] sm:$0xff]
        %v578 = vld [vmem:[%s3 + $0x190] sm:$0xff]
        %v579 = vld [vmem:[%s3 + $0x198] sm:$0xff]
        %v580 = vld [vmem:[%s3 + $0x1a0] sm:$0xff]
        %v581 = vld [vmem:[%s3 + $0x1a8] sm:$0xff]
        %v582 = vld [vmem:[%s3 + $0x1b0] sm:$0xff]
        %v583 = vld [vmem:[%s3 + $0x1b8] sm:$0xff]
        %v584 = vld [vmem:[%s3 + $0x1c0] sm:$0xff]
        %v585 = vld [vmem:[%s3 + $0x1c8] sm:$0xff]
        %v586 = vld [vmem:[%s3 + $0x1d0] sm:$0xff]
        %v587 = vld [vmem:[%s3 + $0x1d8] sm:$0xff]
        %v588 = vld [vmem:[%s3 + $0x1e0] sm:$0xff]
        %v589 = vld [vmem:[%s3 + $0x1e8] sm:$0xff]
        %v590 = vld [vmem:[%s3 + $0x1f0] sm:$0xff]
        %v591 = vld [vmem:[%s3 + $0x1f8] sm:$0xff]
        %v592 = vld [vmem:[%s3 + $0x200] sm:$0xff]
        %v593 = vld [vmem:[%s3 + $0x208] sm:$0xff]
        %v594 = vld [vmem:[%s3 + $0x210] sm:$0xff]
        %v595 = vld [vmem:[%s3 + $0x218] sm:$0xff]
        %v596 = vld [vmem:[%s3 + $0x220] sm:$0xff]
        %v597 = vld [vmem:[%s3 + $0x228] sm:$0xff]
        %v598 = vld [vmem:[%s3 + $0x230] sm:$0xff]
        %v599 = vld [vmem:[%s3 + $0x238] sm:$0xff]
        %v600 = vld [vmem:[%s3 + $0x240] sm:$0xff]
        %v601 = vld [vmem:[%s3 + $0x248] sm:$0xff]
        %v602 = vld [vmem:[%s3 + $0x250] sm:$0xff]
        %v603 = vld [vmem:[%s3 + $0x258] sm:$0xff]
        %v604 = vld [vmem:[%s3 + $0x260] sm:$0xff]
        %v605 = vld [vmem:[%s3 + $0x268] sm:$0xff]
        %v606 = vld [vmem:[%s3 + $0x270] sm:$0xff]
        %v607 = vld [vmem:[%s3 + $0x278] sm:$0xff]
        %v608 = vld [vmem:[%s3 + $0x280] sm:$0xff]
        %v609 = vld [vmem:[%s3 + $0x288] sm:$0xff]
        %v610 = vld [vmem:[%s3 + $0x290] sm:$0xff]
        %v611 = vld [vmem:[%s3 + $0x298] sm:$0xff]
        %v612 = vld [vmem:[%s3 + $0x2a0] sm:$0xff]
        %v613 = vld [vmem:[%s3 + $0x2a8] sm:$0xff]
        %v614 = vld [vmem:[%s3 + $0x2b0] sm:$0xff]
        %v615 = vld [vmem:[%s3 + $0x2b8] sm:$0xff]
        %v616 = vld [vmem:[%s3 + $0x2c0] sm:$0xff]
        %v617 = vld [vmem:[%s3 + $0x2c8] sm:$0xff]
        %v618 = vld [vmem:[%s3 + $0x2d0] sm:$0xff]
        %v619 = vld [vmem:[%s3 + $0x2d8] sm:$0xff]
        %v620 = vld [vmem:[%s3 + $0x2e0] sm:$0xff]
        %v621 = vld [vmem:[%s3 + $0x2e8] sm:$0xff]
        %v622 = vld [vmem:[%s3 + $0x2f0] sm:$0xff]
        %v623 = vld [vmem:[%s3 + $0x2f8] sm:$0xff]
        %v624 = vld [vmem:[%s3 + $0x300] sm:$0xff]
        %v625 = vld [vmem:[%s3 + $0x308] sm:$0xff]
        %v626 = vld [vmem:[%s3 + $0x310] sm:$0xff]
        %v627 = vld [vmem:[%s3 + $0x318] sm:$0xff]
        %v628 = vld [vmem:[%s3 + $0x320] sm:$0xff]
        %v629 = vld [vmem:[%s3 + $0x328] sm:$0xff]
        %v630 = vld [vmem:[%s3 + $0x330] sm:$0xff]
        %v631 = vld [vmem:[%s3 + $0x338] sm:$0xff]
        %v632 = vld [vmem:[%s3 + $0x340] sm:$0xff]
        %v633 = vld [vmem:[%s3 + $0x348] sm:$0xff]
        %v634 = vld [vmem:[%s3 + $0x350] sm:$0xff]
        %v635 = vld [vmem:[%s3 + $0x358] sm:$0xff]
        %v636 = vld [vmem:[%s3 + $0x360] sm:$0xff]
        %v637 = vld [vmem:[%s3 + $0x368] sm:$0xff]
        %v638 = vld [vmem:[%s3 + $0x370] sm:$0xff]
        %v639 = vld [vmem:[%s3 + $0x378] sm:$0xff]
        %v640 = vld [vmem:[%s3 + $0x380] sm:$0xff]
        %v641 = vld [vmem:[%s3 + $0x388] sm:$0xff]
        %v642 = vld [vmem:[%s3 + $0x390] sm:$0xff]
        %v643 = vld [vmem:[%s3 + $0x398] sm:$0xff]
        %v644 = vld [vmem:[%s3 + $0x3a0] sm:$0xff]
        %v645 = vld [vmem:[%s3 + $0x3a8] sm:$0xff]
        %v646 = vld [vmem:[%s3 + $0x3b0] sm:$0xff]
        %v647 = vld [vmem:[%s3 + $0x3b8] sm:$0xff]
        %v648 = vld [vmem:[%s3 + $0x3c0] sm:$0xf]
        %v649 = vld [vmem:[%s3 + $0x3c8] sm:$0xf]
        %v650 = vld [vmem:[%s3 + $0x3d0] sm:$0xf]
        %vm651 = vcmask 556032
        %v653 = vsel %vm651, %v524, 0
        %v656 = vsel %vm651, %v527, 0
        %vm658 = vcmask 1043456
        %v660 = vsel %vm658, %v648, 0
        %v663 = vsel %vm658, %v649, 0
        %v666 = vsel %vm658, %v650, 0
        %668 = vmatprep.subr.mxu0 %v574
        %669 = vmatpush1.msra.mxu0 %v573
        %670 = vmatprep.subr.mxu0 %v571
        %671 = vmatpush1.msra.mxu0 %v570
        %672 = vmatprep.subr.mxu0 %v568
        %673 = vmatpush1.msra.mxu0 %v567
        %674 = vmatprep.subr.mxu0 %v565
        %675 = vmatpush1.msra.mxu0 %v564
        %676 = vmatprep.subr.mxu0 %v562
        %677 = vmatpush1.msra.mxu0 %v561
        %678 = vmatprep.subr.mxu0 %v559
        %679 = vmatpush1.msra.mxu0 %v558
        %680 = vmatprep.subr.mxu0 %v556
        %681 = vmatpush1.msra.mxu0 %v555
        %682 = vmatprep.subr.mxu0 %v553
        %683 = vmatpush1.msra.mxu0 %v552
        %684 = vmatprep.subr.mxu0 %v550
        %685 = vmatpush1.msra.mxu0 %v549
        %686 = vmatprep.subr.mxu0 %v547
        %687 = vmatpush1.msra.mxu0 %v546
        %688 = vmatprep.subr.mxu0 %v544
        %689 = vmatpush1.msra.mxu0 %v543
        %690 = vmatprep.subr.mxu0 %v541
        %691 = vmatpush1.msra.mxu0 %v540
        %692 = vmatprep.subr.mxu0 %v538
        %693 = vmatpush1.msra.mxu0 %v537
        %694 = vmatprep.subr.mxu0 %v535
        %695 = vmatpush1.msra.mxu0 %v534
        %696 = vmatprep.subr.mxu0 %v532
        %697 = vmatpush1.msra.mxu0 %v531
        %698 = vmatprep.subr.mxu0 %v529
        %699 = vmatpush1.msra.mxu0 %v528
        %700 = vmatprep.subr.mxu0 %v622
        %701 = vmatpush2.msra.mxu0 %v621
        %702 = vmatprep.subr.mxu0 %v619
        %703 = vmatpush2.msra.mxu0 %v618
        %704 = vmatprep.subr.mxu0 %v616
        %705 = vmatpush2.msra.mxu0 %v615
        %706 = vmatprep.subr.mxu0 %v613
        %707 = vmatpush2.msra.mxu0 %v612
        %708 = vmatprep.subr.mxu0 %v610
        %709 = vmatpush2.msra.mxu0 %v609
        %710 = vmatprep.subr.mxu0 %v607
        %711 = vmatpush2.msra.mxu0 %v606
        %712 = vmatprep.subr.mxu0 %v604
        %713 = vmatpush2.msra.mxu0 %v603
        %714 = vmatprep.subr.mxu0 %v601
        %715 = vmatpush2.msra.mxu0 %v600
        %716 = vmatprep.subr.mxu0 %v598
        %717 = vmatpush2.msra.mxu0 %v597
        %718 = vmatprep.subr.mxu0 %v595
        %719 = vmatpush2.msra.mxu0 %v594
        %720 = vmatprep.subr.mxu0 %v592
        %721 = vmatpush2.msra.mxu0 %v591
        %722 = vmatprep.subr.mxu0 %v589
        %723 = vmatpush2.msra.mxu0 %v588
        %724 = vmatprep.subr.mxu0 %v586
        %725 = vmatpush2.msra.mxu0 %v585
        %726 = vmatprep.subr.mxu0 %v583
        %727 = vmatpush2.msra.mxu0 %v582
        %728 = vmatprep.subr.mxu0 %v580
        %729 = vmatpush2.msra.mxu0 %v579
        %730 = vmatprep.subr.mxu0 %v577
        %731 = vmatpush2.msra.mxu0 %v576
        %732 = vmatprep.mubr.f32.mxu0 %v523
        %733 = vmatmul.mubr.f32.gmra.mxu0 %v522
        %v734 = vpop.f32.mrf.mxu0
        %v735 = vadd.f32 0.0, %v734
        %v736 = vpop.f32.mrf.mxu0
        %v737 = vadd.f32 0.0, %v736
        %738 = vmatprep.mubr.f32.mxu0 %v526
        %739 = vmatmul.mubr.f32.gmra.mxu0 %v525
        %v740 = vpop.f32.mrf.mxu0
        %v741 = vadd.f32 0.0, %v740
        %v742 = vpop.f32.mrf.mxu0
        %v743 = vadd.f32 0.0, %v742
        %744 = vdwg.mxu0
        %745 = vmatprep.subr.mxu0 0.0
        %746 = vmatpush1.msra.mxu0 0.0
        %747 = vmatprep.subr.mxu0 0.0
        %748 = vmatpush1.msra.mxu0 0.0
        %749 = vmatprep.subr.mxu0 0.0
        %750 = vmatpush1.msra.mxu0 0.0
        %751 = vmatprep.subr.mxu0 0.0
        %752 = vmatpush1.msra.mxu0 0.0
        %753 = vmatprep.subr.mxu0 0.0
        %754 = vmatpush1.msra.mxu0 0.0
        %755 = vmatprep.subr.mxu0 0.0
        %756 = vmatpush1.msra.mxu0 0.0
        %757 = vmatprep.subr.mxu0 0.0
        %758 = vmatpush1.msra.mxu0 0.0
        %759 = vmatprep.subr.mxu0 %v663
        %760 = vmatpush1.msra.mxu0 %v660
        %761 = vmatprep.subr.mxu0 %v646
        %762 = vmatpush1.msra.mxu0 %v645
        %763 = vmatprep.subr.mxu0 %v643
        %764 = vmatpush1.msra.mxu0 %v642
        %765 = vmatprep.subr.mxu0 %v640
        %766 = vmatpush1.msra.mxu0 %v639
        %767 = vmatprep.subr.mxu0 %v637
        %768 = vmatpush1.msra.mxu0 %v636
        %769 = vmatprep.subr.mxu0 %v634
        %770 = vmatpush1.msra.mxu0 %v633
        %771 = vmatprep.subr.mxu0 %v631
        %772 = vmatpush1.msra.mxu0 %v630
        %773 = vmatprep.subr.mxu0 %v628
        %774 = vmatpush1.msra.mxu0 %v627
        %775 = vmatprep.subr.mxu0 %v625
        %776 = vmatpush1.msra.mxu0 %v624
        %777 = vmatprep.subr.mxu0 0.0
        %778 = vmatpush2.msra.mxu0 0.0
        %779 = vmatprep.subr.mxu0 0.0
        %780 = vmatpush2.msra.mxu0 0.0
        %781 = vmatprep.subr.mxu0 0.0
        %782 = vmatpush2.msra.mxu0 0.0
        %783 = vmatprep.subr.mxu0 0.0
        %784 = vmatpush2.msra.mxu0 0.0
        %785 = vmatprep.subr.mxu0 0.0
        %786 = vmatpush2.msra.mxu0 0.0
        %787 = vmatprep.subr.mxu0 0.0
        %788 = vmatpush2.msra.mxu0 0.0
        %789 = vmatprep.subr.mxu0 0.0
        %790 = vmatpush2.msra.mxu0 0.0
        %791 = vmatprep.subr.mxu0 0.0
        %792 = vmatpush2.msra.mxu0 0.0
        %793 = vmatprep.subr.mxu0 0.0
        %794 = vmatpush2.msra.mxu0 0.0
        %795 = vmatprep.subr.mxu0 0.0
        %796 = vmatpush2.msra.mxu0 0.0
        %797 = vmatprep.subr.mxu0 0.0
        %798 = vmatpush2.msra.mxu0 0.0
        %799 = vmatprep.subr.mxu0 0.0
        %800 = vmatpush2.msra.mxu0 0.0
        %801 = vmatprep.subr.mxu0 0.0
        %802 = vmatpush2.msra.mxu0 0.0
        %803 = vmatprep.subr.mxu0 0.0
        %804 = vmatpush2.msra.mxu0 0.0
        %805 = vmatprep.subr.mxu0 0.0
        %806 = vmatpush2.msra.mxu0 0.0
        %807 = vmatprep.subr.mxu0 0.0
        %808 = vmatpush2.msra.mxu0 0.0
        %809 = vmatprep.mubr.f32.mxu0 0.0
        %810 = vmatmul.mubr.f32.gmra.mxu0 %v653
        %v811 = vpop.f32.mrf.mxu0
        %v812 = vadd.f32 %v735, %v811
        %v813 = vpop.f32.mrf.mxu0
        %v814 = vadd.f32 %v737, %v813
        %815 = vmatprep.mubr.f32.mxu0 0.0
        %816 = vmatmul.mubr.f32.gmra.mxu0 %v656
        %v817 = vpop.f32.mrf.mxu0
        %v818 = vadd.f32 %v741, %v817
        %v819 = vpop.f32.mrf.mxu0
        %v820 = vadd.f32 %v743, %v819
        %821 = vdwg.mxu0
        %822 = vmatprep.subr.mxu0 0.0
        %823 = vmatpush1.msra.mxu0 %v575
        %824 = vmatprep.subr.mxu0 0.0
        %825 = vmatpush1.msra.mxu0 %v572
        %826 = vmatprep.subr.mxu0 0.0
        %827 = vmatpush1.msra.mxu0 %v569
        %828 = vmatprep.subr.mxu0 0.0
        %829 = vmatpush1.msra.mxu0 %v566
        %830 = vmatprep.subr.mxu0 0.0
        %831 = vmatpush1.msra.mxu0 %v563
        %832 = vmatprep.subr.mxu0 0.0
        %833 = vmatpush1.msra.mxu0 %v560
        %834 = vmatprep.subr.mxu0 0.0
        %835 = vmatpush1.msra.mxu0 %v557
        %836 = vmatprep.subr.mxu0 0.0
        %837 = vmatpush1.msra.mxu0 %v554
        %838 = vmatprep.subr.mxu0 0.0
        %839 = vmatpush1.msra.mxu0 %v551
        %840 = vmatprep.subr.mxu0 0.0
        %841 = vmatpush1.msra.mxu0 %v548
        %842 = vmatprep.subr.mxu0 0.0
        %843 = vmatpush1.msra.mxu0 %v545
        %844 = vmatprep.subr.mxu0 0.0
        %845 = vmatpush1.msra.mxu0 %v542
        %846 = vmatprep.subr.mxu0 0.0
        %847 = vmatpush1.msra.mxu0 %v539
        %848 = vmatprep.subr.mxu0 0.0
        %849 = vmatpush1.msra.mxu0 %v536
        %850 = vmatprep.subr.mxu0 0.0
        %851 = vmatpush1.msra.mxu0 %v533
        %852 = vmatprep.subr.mxu0 0.0
        %853 = vmatpush1.msra.mxu0 %v530
        %854 = vmatprep.subr.mxu0 0.0
        %855 = vmatpush2.msra.mxu0 %v623
        %856 = vmatprep.subr.mxu0 0.0
        %857 = vmatpush2.msra.mxu0 %v620
        %858 = vmatprep.subr.mxu0 0.0
        %859 = vmatpush2.msra.mxu0 %v617
        %860 = vmatprep.subr.mxu0 0.0
        %861 = vmatpush2.msra.mxu0 %v614
        %862 = vmatprep.subr.mxu0 0.0
        %863 = vmatpush2.msra.mxu0 %v611
        %864 = vmatprep.subr.mxu0 0.0
        %865 = vmatpush2.msra.mxu0 %v608
        %866 = vmatprep.subr.mxu0 0.0
        %867 = vmatpush2.msra.mxu0 %v605
        %868 = vmatprep.subr.mxu0 0.0
        %869 = vmatpush2.msra.mxu0 %v602
        %870 = vmatprep.subr.mxu0 0.0
        %871 = vmatpush2.msra.mxu0 %v599
        %872 = vmatprep.subr.mxu0 0.0
        %873 = vmatpush2.msra.mxu0 %v596
        %874 = vmatprep.subr.mxu0 0.0
        %875 = vmatpush2.msra.mxu0 %v593
        %876 = vmatprep.subr.mxu0 0.0
        %877 = vmatpush2.msra.mxu0 %v590
        %878 = vmatprep.subr.mxu0 0.0
        %879 = vmatpush2.msra.mxu0 %v587
        %880 = vmatprep.subr.mxu0 0.0
        %881 = vmatpush2.msra.mxu0 %v584
        %882 = vmatprep.subr.mxu0 0.0
        %883 = vmatpush2.msra.mxu0 %v581
        %884 = vmatprep.subr.mxu0 0.0
        %885 = vmatpush2.msra.mxu0 %v578
        %886 = vmatprep.mubr.f32.mxu0 %v523
        %887 = vmatmul.mubr.f32.gmra.mxu0 %v522
        %v888 = vpop.f32.mrf.mxu0
        %v889 = vadd.f32 0.0, %v888
        %v890 = vpop.f32.mrf.mxu0
        %891 = vmatprep.mubr.f32.mxu0 %v526
        %892 = vmatmul.mubr.f32.gmra.mxu0 %v525
        %v893 = vpop.f32.mrf.mxu0
        %v894 = vadd.f32 0.0, %v893
        %v895 = vpop.f32.mrf.mxu0
        %896 = vdwg.mxu0
        %897 = vmatprep.subr.mxu0 0.0
        %898 = vmatpush1.msra.mxu0 0.0
        %899 = vmatprep.subr.mxu0 0.0
        %900 = vmatpush1.msra.mxu0 0.0
        %901 = vmatprep.subr.mxu0 0.0
        %902 = vmatpush1.msra.mxu0 0.0
        %903 = vmatprep.subr.mxu0 0.0
        %904 = vmatpush1.msra.mxu0 0.0
        %905 = vmatprep.subr.mxu0 0.0
        %906 = vmatpush1.msra.mxu0 0.0
        %907 = vmatprep.subr.mxu0 0.0
        %908 = vmatpush1.msra.mxu0 0.0
        %909 = vmatprep.subr.mxu0 0.0
        %910 = vmatpush1.msra.mxu0 0.0
        %911 = vmatprep.subr.mxu0 0.0
        %912 = vmatpush1.msra.mxu0 %v666
        %913 = vmatprep.subr.mxu0 0.0
        %914 = vmatpush1.msra.mxu0 %v647
        %915 = vmatprep.subr.mxu0 0.0
        %916 = vmatpush1.msra.mxu0 %v644
        %917 = vmatprep.subr.mxu0 0.0
        %918 = vmatpush1.msra.mxu0 %v641
        %919 = vmatprep.subr.mxu0 0.0
        %920 = vmatpush1.msra.mxu0 %v638
        %921 = vmatprep.subr.mxu0 0.0
        %922 = vmatpush1.msra.mxu0 %v635
        %923 = vmatprep.subr.mxu0 0.0
        %924 = vmatpush1.msra.mxu0 %v632
        %925 = vmatprep.subr.mxu0 0.0
        %926 = vmatpush1.msra.mxu0 %v629
        %927 = vmatprep.subr.mxu0 0.0
        %928 = vmatpush1.msra.mxu0 %v626
        %929 = vmatprep.subr.mxu0 0.0
        %930 = vmatpush2.msra.mxu0 0.0
        %931 = vmatprep.subr.mxu0 0.0
        %932 = vmatpush2.msra.mxu0 0.0
        %933 = vmatprep.subr.mxu0 0.0
        %934 = vmatpush2.msra.mxu0 0.0
        %935 = vmatprep.subr.mxu0 0.0
        %936 = vmatpush2.msra.mxu0 0.0
        %937 = vmatprep.subr.mxu0 0.0
        %938 = vmatpush2.msra.mxu0 0.0
        %939 = vmatprep.subr.mxu0 0.0
        %940 = vmatpush2.msra.mxu0 0.0
        %941 = vmatprep.subr.mxu0 0.0
        %942 = vmatpush2.msra.mxu0 0.0
        %943 = vmatprep.subr.mxu0 0.0
        %944 = vmatpush2.msra.mxu0 0.0
        %945 = vmatprep.subr.mxu0 0.0
        %946 = vmatpush2.msra.mxu0 0.0
        %947 = vmatprep.subr.mxu0 0.0
        %948 = vmatpush2.msra.mxu0 0.0
        %949 = vmatprep.subr.mxu0 0.0
        %950 = vmatpush2.msra.mxu0 0.0
        %951 = vmatprep.subr.mxu0 0.0
        %952 = vmatpush2.msra.mxu0 0.0
        %953 = vmatprep.subr.mxu0 0.0
        %954 = vmatpush2.msra.mxu0 0.0
        %955 = vmatprep.subr.mxu0 0.0
        %956 = vmatpush2.msra.mxu0 0.0
        %957 = vmatprep.subr.mxu0 0.0
        %958 = vmatpush2.msra.mxu0 0.0
        %959 = vmatprep.subr.mxu0 0.0
        %960 = vmatpush2.msra.mxu0 0.0
        %961 = vmatprep.mubr.f32.mxu0 0.0
        %962 = vmatmul.mubr.f32.gmra.mxu0 %v653
        %v963 = vpop.f32.mrf.mxu0
        %v964 = vadd.f32 %v889, %v963
        %v965 = vpop.f32.mrf.mxu0
        %966 = vmatprep.mubr.f32.mxu0 0.0
        %967 = vmatmul.mubr.f32.gmra.mxu0 %v656
        %v968 = vpop.f32.mrf.mxu0
        %v969 = vadd.f32 %v894, %v968
        %v970 = vpop.f32.mrf.mxu0
        %971 = vdwg.mxu0
        %v972 = vpack.c.bf16 %v818, %v812
        %v973 = vpack.c.bf16 %v820, %v814
        %v974 = vpack.c.bf16 %v969, %v964
        %978 = vrot.lane.b32.xlu0 %v972, 127
        %v979 = vpop.permute.xlu0 %978
        %980 = vrot.lane.b32.xlu0 %v973, 127
        %v981 = vpop.permute.xlu0 %980
        %982 = vrot.lane.b32.xlu0 %v974, 127
        %v983 = vpop.permute.xlu0 %982
        %v984 = vsel %vm321, %v979, %v981
        %v985 = vsel %vm321, %v981, %v983
        %989 = vrot.lane.b32.xlu0 %v972, 126
        %v990 = vpop.permute.xlu0 %989
        %991 = vrot.lane.b32.xlu0 %v973, 126
        %v992 = vpop.permute.xlu0 %991
        %993 = vrot.lane.b32.xlu0 %v974, 126
        %v994 = vpop.permute.xlu0 %993
        %v995 = vsel %vm333, %v990, %v992
        %v996 = vsel %vm333, %v992, %v994
        %1000 = vrot.lane.b32.xlu0 %v972, 110
        %v1001 = vpop.permute.xlu0 %1000
        %1002 = vrot.lane.b32.xlu0 %v973, 110
        %v1003 = vpop.permute.xlu0 %1002
        %1004 = vrot.lane.b32.xlu0 %v974, 110
        %v1005 = vpop.permute.xlu0 %1004
        %v1006 = vsel %vm345, %v1001, %v1003
        %v1007 = vsel %vm345, %v1003, %v1005
        %1011 = vrot.lane.b32.xlu0 %v972, 109
        %v1012 = vpop.permute.xlu0 %1011
        %1013 = vrot.lane.b32.xlu0 %v973, 109
        %v1014 = vpop.permute.xlu0 %1013
        %1015 = vrot.lane.b32.xlu0 %v974, 109
        %v1016 = vpop.permute.xlu0 %1015
        %v1017 = vsel %vm357, %v1012, %v1014
        %v1018 = vsel %vm357, %v1014, %v1016
        %1022 = vrot.lane.b32.xlu0 %v972, 108
        %v1023 = vpop.permute.xlu0 %1022
        %1024 = vrot.lane.b32.xlu0 %v973, 108
        %v1025 = vpop.permute.xlu0 %1024
        %1026 = vrot.lane.b32.xlu0 %v974, 108
        %v1027 = vpop.permute.xlu0 %1026
        %v1028 = vsel %vm369, %v1023, %v1025
        %v1029 = vsel %vm369, %v1025, %v1027
        %1033 = vrot.lane.b32.xlu0 %v972, 92
        %v1034 = vpop.permute.xlu0 %1033
        %1035 = vrot.lane.b32.xlu0 %v973, 92
        %v1036 = vpop.permute.xlu0 %1035
        %1037 = vrot.lane.b32.xlu0 %v974, 92
        %v1038 = vpop.permute.xlu0 %1037
        %v1039 = vsel %vm381, %v1034, %v1036
        %v1040 = vsel %vm381, %v1036, %v1038
        %1044 = vrot.lane.b32.xlu0 %v972, 91
        %v1045 = vpop.permute.xlu0 %1044
        %1046 = vrot.lane.b32.xlu0 %v973, 91
        %v1047 = vpop.permute.xlu0 %1046
        %1048 = vrot.lane.b32.xlu0 %v974, 91
        %v1049 = vpop.permute.xlu0 %1048
        %v1050 = vsel %vm393, %v1045, %v1047
        %v1051 = vsel %vm393, %v1047, %v1049
        %1055 = vrot.lane.b32.xlu0 %v972, 90
        %v1056 = vpop.permute.xlu0 %1055
        %1057 = vrot.lane.b32.xlu0 %v973, 90
        %v1058 = vpop.permute.xlu0 %1057
        %1059 = vrot.lane.b32.xlu0 %v974, 90
        %v1060 = vpop.permute.xlu0 %1059
        %v1061 = vsel %vm405, %v1056, %v1058
        %v1062 = vsel %vm405, %v1058, %v1060
        %v1066 = vld [vmem:[%s4] sm:$0xff]
        %v1067 = vld [vmem:[%s4 + $0x8] sm:$0xff]
        %v1068 = vld [vmem:[%s5] sm:$0xff]
        %v1069 = vld [vmem:[%s5 + $0x8] sm:$0xff]
        %1071 = vset.pattern.permute.xlu0 0
        %1072 = vperm.xlu0 %1071, %v1068
        %v1073 = vpop.permute.xlu0 %1072
        %1076 = vset.pattern.permute.xlu0 0
        %1077 = vperm.xlu0 %1076, %v1069
        %v1078 = vpop.permute.xlu0 %1077
        %v1082 = vunpack.c.l.b16 %v1066
        %v1083 = vunpack.c.h.b16 %v1066
        %v1084 = vunpack.c.l.b16 %v1067
        %v1085 = vunpack.c.h.b16 %v1067
        %v1086 = vpack.c.b16 %v1084, %v1082
        %v1087 = vpack.c.b16 %v1085, %v1083
        %v1090 = vsel %vm434, %v1087, 0
        %1092 = vmatprep.subr.bf16.mxu0 %v1051
        %1093 = vmatpush1.bf16.msra.mxu0 %v1050
        %1094 = vmatprep.subr.bf16.mxu0 %v1040
        %1095 = vmatpush1.bf16.msra.mxu0 %v1039
        %1096 = vmatprep.subr.bf16.mxu0 %v1029
        %1097 = vmatpush1.bf16.msra.mxu0 %v1028
        %1098 = vmatprep.subr.bf16.mxu0 %v1018
        %1099 = vmatpush1.bf16.msra.mxu0 %v1017
        %1100 = vmatprep.subr.bf16.mxu0 %v1007
        %1101 = vmatpush1.bf16.msra.mxu0 %v1006
        %1102 = vmatprep.subr.bf16.mxu0 %v996
        %1103 = vmatpush1.bf16.msra.mxu0 %v995
        %1104 = vmatprep.subr.bf16.mxu0 %v985
        %1105 = vmatpush1.bf16.msra.mxu0 %v984
        %1106 = vmatprep.subr.bf16.mxu0 %v973
        %1107 = vmatpush1.bf16.msra.mxu0 %v972
        %1108 = vmatprep.subr.bf16.mxu0 0
        %1109 = vmatpush2.bf16.msra.mxu0 0
        %1110 = vmatprep.subr.bf16.mxu0 0
        %1111 = vmatpush2.bf16.msra.mxu0 0
        %1112 = vmatprep.subr.bf16.mxu0 0
        %1113 = vmatpush2.bf16.msra.mxu0 0
        %1114 = vmatprep.subr.bf16.mxu0 0
        %1115 = vmatpush2.bf16.msra.mxu0 0
        %1116 = vmatprep.subr.bf16.mxu0 0
        %1117 = vmatpush2.bf16.msra.mxu0 0
        %1118 = vmatprep.subr.bf16.mxu0 0
        %1119 = vmatpush2.bf16.msra.mxu0 0
        %1120 = vmatprep.subr.bf16.mxu0 0
        %1121 = vmatpush2.bf16.msra.mxu0 0
        %1122 = vmatprep.subr.bf16.mxu0 %v1062
        %1123 = vmatpush2.bf16.msra.mxu0 %v1061
        %1124 = vmatprep.mubr.bf16.mxu0 %v1090
        %1125 = vmatmul.mubr.bf16.gmra.mxu0 %v1086
        %v1126 = vpop.f32.mrf.mxu0
        %v1127 = vadd.f32 %v1073, %v1126
        %v1128 = vpop.f32.mrf.mxu0
        %v1129 = vadd.f32 %v1073, %v1128
        %v1130 = vpop.f32.mrf.mxu0
        %v1131 = vadd.f32 %v1078, %v1130
        %v1132 = vpop.f32.mrf.mxu0
        %v1133 = vadd.f32 %v1078, %v1132
        %1134 = vdwg.mxu0
        %1135 = vmatprep.subr.bf16.mxu0 0
        %1136 = vmatpush1.bf16.msra.mxu0 %v1049
        %1137 = vmatprep.subr.bf16.mxu0 0
        %1138 = vmatpush1.bf16.msra.mxu0 %v1038
        %1139 = vmatprep.subr.bf16.mxu0 0
        %1140 = vmatpush1.bf16.msra.mxu0 %v1027
        %1141 = vmatprep.subr.bf16.mxu0 0
        %1142 = vmatpush1.bf16.msra.mxu0 %v1016
        %1143 = vmatprep.subr.bf16.mxu0 0
        %1144 = vmatpush1.bf16.msra.mxu0 %v1005
        %1145 = vmatprep.subr.bf16.mxu0 0
        %1146 = vmatpush1.bf16.msra.mxu0 %v994
        %1147 = vmatprep.subr.bf16.mxu0 0
        %1148 = vmatpush1.bf16.msra.mxu0 %v983
        %1149 = vmatprep.subr.bf16.mxu0 0
        %1150 = vmatpush1.bf16.msra.mxu0 %v974
        %1151 = vmatprep.subr.bf16.mxu0 0
        %1152 = vmatpush2.bf16.msra.mxu0 0
        %1153 = vmatprep.subr.bf16.mxu0 0
        %1154 = vmatpush2.bf16.msra.mxu0 0
        %1155 = vmatprep.subr.bf16.mxu0 0
        %1156 = vmatpush2.bf16.msra.mxu0 0
        %1157 = vmatprep.subr.bf16.mxu0 0
        %1158 = vmatpush2.bf16.msra.mxu0 0
        %1159 = vmatprep.subr.bf16.mxu0 0
        %1160 = vmatpush2.bf16.msra.mxu0 0
        %1161 = vmatprep.subr.bf16.mxu0 0
        %1162 = vmatpush2.bf16.msra.mxu0 0
        %1163 = vmatprep.subr.bf16.mxu0 0
        %1164 = vmatpush2.bf16.msra.mxu0 0
        %1165 = vmatprep.subr.bf16.mxu0 0
        %1166 = vmatpush2.bf16.msra.mxu0 %v1060
        %1167 = vmatprep.mubr.bf16.mxu0 %v1090
        %1168 = vmatmul.mubr.bf16.gmra.mxu0 %v1086
        %v1169 = vpop.f32.mrf.mxu0
        %v1170 = vadd.f32 %v1073, %v1169
        %v1171 = vpop.f32.mrf.mxu0
        %v1172 = vpop.f32.mrf.mxu0
        %v1173 = vadd.f32 %v1078, %v1172
        %v1174 = vpop.f32.mrf.mxu0
        %1175 = vdwg.mxu0
        %v1176 = vmax.f32 %v1127, 0.0
        %v1177 = vmax.f32 %v1129, 0.0
        %v1178 = vmax.f32 %v1170, 0.0
        %v1179 = vmax.f32 %v1131, 0.0
        %v1180 = vmax.f32 %v1133, 0.0
        %v1181 = vmax.f32 %v1173, 0.0
        %v1182 = vld [vmem:[#allocation2] sm:$0xff]
        %v1183 = vld [vmem:[#allocation2 + $0x8] sm:$0xff]
        %v1184 = vld [vmem:[#allocation2 + $0x10] sm:$0xff]
        %v1185 = vld [vmem:[#allocation2 + $0x18] sm:$0xff]
        %v1186 = vld [vmem:[#allocation2 + $0x20] sm:$0xff]
        %v1187 = vld [vmem:[#allocation2 + $0x28] sm:$0xff]
        %v1188 = vld [vmem:[#allocation2 + $0x30] sm:$0xff]
        %v1189 = vld [vmem:[#allocation2 + $0x38] sm:$0xff]
        %v1190 = vld [vmem:[#allocation2 + $0x40] sm:$0xff]
        %v1191 = vld [vmem:[#allocation2 + $0x48] sm:$0xff]
        %v1192 = vld [vmem:[#allocation2 + $0x50] sm:$0xff]
        %v1193 = vld [vmem:[#allocation2 + $0x58] sm:$0xff]
        %v1194 = vld [vmem:[#allocation2 + $0x60] sm:$0xff]
        %v1195 = vld [vmem:[#allocation2 + $0x68] sm:$0xff]
        %v1196 = vld [vmem:[#allocation2 + $0x70] sm:$0xff]
        %v1197 = vld [vmem:[#allocation2 + $0x78] sm:$0xff]
        %v1198 = vld [vmem:[#allocation2 + $0x80] sm:$0xff]
        %v1199 = vld [vmem:[#allocation2 + $0x88] sm:$0xff]
        %v1200 = vld [vmem:[#allocation2 + $0x90] sm:$0xff]
        %v1201 = vld [vmem:[#allocation2 + $0x98] sm:$0xff]
        %v1202 = vld [vmem:[#allocation2 + $0xa0] sm:$0xff]
        %v1203 = vld [vmem:[#allocation2 + $0xa8] sm:$0xff]
        %v1204 = vld [vmem:[#allocation2 + $0xb0] sm:$0xff]
        %v1205 = vld [vmem:[#allocation2 + $0xb8] sm:$0xff]
        %v1206 = vld [vmem:[#allocation2 + $0xc0] sm:$0xff]
        %v1207 = vld [vmem:[#allocation2 + $0xc8] sm:$0xff]
        %v1208 = vld [vmem:[#allocation2 + $0xd0] sm:$0xff]
        %v1209 = vld [vmem:[#allocation2 + $0xd8] sm:$0xff]
        %v1210 = vld [vmem:[#allocation2 + $0xe0] sm:$0xff]
        %v1211 = vld [vmem:[#allocation2 + $0xe8] sm:$0xff]
        %v1212 = vld [vmem:[#allocation2 + $0xf0] sm:$0xff]
        %v1213 = vld [vmem:[#allocation2 + $0xf8] sm:$0xff]
        %v1214 = vld [vmem:[#allocation2 + $0x100] sm:$0xff]
        %v1215 = vld [vmem:[#allocation2 + $0x108] sm:$0xff]
        %v1216 = vld [vmem:[#allocation2 + $0x110] sm:$0xff]
        %v1217 = vld [vmem:[#allocation2 + $0x118] sm:$0xff]
        %v1218 = vld [vmem:[#allocation2 + $0x120] sm:$0xff]
        %v1219 = vld [vmem:[#allocation2 + $0x128] sm:$0xff]
        %v1220 = vld [vmem:[#allocation2 + $0x130] sm:$0xff]
        %v1221 = vld [vmem:[#allocation2 + $0x138] sm:$0xff]
        %v1222 = vld [vmem:[#allocation2 + $0x140] sm:$0xf]
        %v1224 = vsel %vm651, %v1178, 0
        %v1227 = vsel %vm651, %v1181, 0
        %v1230 = vsel %vm658, %v1222, 0
        %1232 = vmatprep.subr.mxu0 0.0
        %1233 = vmatpush1.msra.mxu0 %v1197
        %1234 = vmatprep.subr.mxu0 0.0
        %1235 = vmatpush1.msra.mxu0 %v1196
        %1236 = vmatprep.subr.mxu0 0.0
        %1237 = vmatpush1.msra.mxu0 %v1195
        %1238 = vmatprep.subr.mxu0 0.0
        %1239 = vmatpush1.msra.mxu0 %v1194
        %1240 = vmatprep.subr.mxu0 0.0
        %1241 = vmatpush1.msra.mxu0 %v1193
        %1242 = vmatprep.subr.mxu0 0.0
        %1243 = vmatpush1.msra.mxu0 %v1192
        %1244 = vmatprep.subr.mxu0 0.0
        %1245 = vmatpush1.msra.mxu0 %v1191
        %1246 = vmatprep.subr.mxu0 0.0
        %1247 = vmatpush1.msra.mxu0 %v1190
        %1248 = vmatprep.subr.mxu0 0.0
        %1249 = vmatpush1.msra.mxu0 %v1189
        %1250 = vmatprep.subr.mxu0 0.0
        %1251 = vmatpush1.msra.mxu0 %v1188
        %1252 = vmatprep.subr.mxu0 0.0
        %1253 = vmatpush1.msra.mxu0 %v1187
        %1254 = vmatprep.subr.mxu0 0.0
        %1255 = vmatpush1.msra.mxu0 %v1186
        %1256 = vmatprep.subr.mxu0 0.0
        %1257 = vmatpush1.msra.mxu0 %v1185
        %1258 = vmatprep.subr.mxu0 0.0
        %1259 = vmatpush1.msra.mxu0 %v1184
        %1260 = vmatprep.subr.mxu0 0.0
        %1261 = vmatpush1.msra.mxu0 %v1183
        %1262 = vmatprep.subr.mxu0 0.0
        %1263 = vmatpush1.msra.mxu0 %v1182
        %1264 = vmatprep.subr.mxu0 0.0
        %1265 = vmatpush2.msra.mxu0 %v1213
        %1266 = vmatprep.subr.mxu0 0.0
        %1267 = vmatpush2.msra.mxu0 %v1212
        %1268 = vmatprep.subr.mxu0 0.0
        %1269 = vmatpush2.msra.mxu0 %v1211
        %1270 = vmatprep.subr.mxu0 0.0
        %1271 = vmatpush2.msra.mxu0 %v1210
        %1272 = vmatprep.subr.mxu0 0.0
        %1273 = vmatpush2.msra.mxu0 %v1209
        %1274 = vmatprep.subr.mxu0 0.0
        %1275 = vmatpush2.msra.mxu0 %v1208
        %1276 = vmatprep.subr.mxu0 0.0
        %1277 = vmatpush2.msra.mxu0 %v1207
        %1278 = vmatprep.subr.mxu0 0.0
        %1279 = vmatpush2.msra.mxu0 %v1206
        %1280 = vmatprep.subr.mxu0 0.0
        %1281 = vmatpush2.msra.mxu0 %v1205
        %1282 = vmatprep.subr.mxu0 0.0
        %1283 = vmatpush2.msra.mxu0 %v1204
        %1284 = vmatprep.subr.mxu0 0.0
        %1285 = vmatpush2.msra.mxu0 %v1203
        %1286 = vmatprep.subr.mxu0 0.0
        %1287 = vmatpush2.msra.mxu0 %v1202
        %1288 = vmatprep.subr.mxu0 0.0
        %1289 = vmatpush2.msra.mxu0 %v1201
        %1290 = vmatprep.subr.mxu0 0.0
        %1291 = vmatpush2.msra.mxu0 %v1200
        %1292 = vmatprep.subr.mxu0 0.0
        %1293 = vmatpush2.msra.mxu0 %v1199
        %1294 = vmatprep.subr.mxu0 0.0
        %1295 = vmatpush2.msra.mxu0 %v1198
        %1296 = vmatprep.mubr.f32.mxu0 %v1177
        %1297 = vmatmul.mubr.f32.gmra.mxu0 %v1176
        %v1298 = vpop.f32.mrf.mxu0
        %v1299 = vadd.f32 0.0, %v1298
        %v1300 = vpop.f32.mrf.mxu0
        %1301 = vmatprep.mubr.f32.mxu0 %v1180
        %1302 = vmatmul.mubr.f32.gmra.mxu0 %v1179
        %v1303 = vpop.f32.mrf.mxu0
        %v1304 = vadd.f32 0.0, %v1303
        %v1305 = vpop.f32.mrf.mxu0
        %1306 = vdwg.mxu0
        %1307 = vmatprep.subr.mxu0 0.0
        %1308 = vmatpush1.msra.mxu0 0.0
        %1309 = vmatprep.subr.mxu0 0.0
        %1310 = vmatpush1.msra.mxu0 0.0
        %1311 = vmatprep.subr.mxu0 0.0
        %1312 = vmatpush1.msra.mxu0 0.0
        %1313 = vmatprep.subr.mxu0 0.0
        %1314 = vmatpush1.msra.mxu0 0.0
        %1315 = vmatprep.subr.mxu0 0.0
        %1316 = vmatpush1.msra.mxu0 0.0
        %1317 = vmatprep.subr.mxu0 0.0
        %1318 = vmatpush1.msra.mxu0 0.0
        %1319 = vmatprep.subr.mxu0 0.0
        %1320 = vmatpush1.msra.mxu0 0.0
        %1321 = vmatprep.subr.mxu0 0.0
        %1322 = vmatpush1.msra.mxu0 %v1230
        %1323 = vmatprep.subr.mxu0 0.0
        %1324 = vmatpush1.msra.mxu0 %v1221
        %1325 = vmatprep.subr.mxu0 0.0
        %1326 = vmatpush1.msra.mxu0 %v1220
        %1327 = vmatprep.subr.mxu0 0.0
        %1328 = vmatpush1.msra.mxu0 %v1219
        %1329 = vmatprep.subr.mxu0 0.0
        %1330 = vmatpush1.msra.mxu0 %v1218
        %1331 = vmatprep.subr.mxu0 0.0
        %1332 = vmatpush1.msra.mxu0 %v1217
        %1333 = vmatprep.subr.mxu0 0.0
        %1334 = vmatpush1.msra.mxu0 %v1216
        %1335 = vmatprep.subr.mxu0 0.0
        %1336 = vmatpush1.msra.mxu0 %v1215
        %1337 = vmatprep.subr.mxu0 0.0
        %1338 = vmatpush1.msra.mxu0 %v1214
        %1339 = vmatprep.subr.mxu0 0.0
        %1340 = vmatpush2.msra.mxu0 0.0
        %1341 = vmatprep.subr.mxu0 0.0
        %1342 = vmatpush2.msra.mxu0 0.0
        %1343 = vmatprep.subr.mxu0 0.0
        %1344 = vmatpush2.msra.mxu0 0.0
        %1345 = vmatprep.subr.mxu0 0.0
        %1346 = vmatpush2.msra.mxu0 0.0
        %1347 = vmatprep.subr.mxu0 0.0
        %1348 = vmatpush2.msra.mxu0 0.0
        %1349 = vmatprep.subr.mxu0 0.0
        %1350 = vmatpush2.msra.mxu0 0.0
        %1351 = vmatprep.subr.mxu0 0.0
        %1352 = vmatpush2.msra.mxu0 0.0
        %1353 = vmatprep.subr.mxu0 0.0
        %1354 = vmatpush2.msra.mxu0 0.0
        %1355 = vmatprep.subr.mxu0 0.0
        %1356 = vmatpush2.msra.mxu0 0.0
        %1357 = vmatprep.subr.mxu0 0.0
        %1358 = vmatpush2.msra.mxu0 0.0
        %1359 = vmatprep.subr.mxu0 0.0
        %1360 = vmatpush2.msra.mxu0 0.0
        %1361 = vmatprep.subr.mxu0 0.0
        %1362 = vmatpush2.msra.mxu0 0.0
        %1363 = vmatprep.subr.mxu0 0.0
        %1364 = vmatpush2.msra.mxu0 0.0
        %1365 = vmatprep.subr.mxu0 0.0
        %1366 = vmatpush2.msra.mxu0 0.0
        %1367 = vmatprep.subr.mxu0 0.0
        %1368 = vmatpush2.msra.mxu0 0.0
        %1369 = vmatprep.subr.mxu0 0.0
        %1370 = vmatpush2.msra.mxu0 0.0
        %1371 = vmatprep.mubr.f32.mxu0 0.0
        %1372 = vmatmul.mubr.f32.gmra.mxu0 %v1224
        %v1373 = vpop.f32.mrf.mxu0
        %v1374 = vadd.f32 %v1299, %v1373
        %v1375 = vpop.f32.mrf.mxu0
        %1376 = vmatprep.mubr.f32.mxu0 0.0
        %1377 = vmatmul.mubr.f32.gmra.mxu0 %v1227
        %v1378 = vpop.f32.mrf.mxu0
        %v1379 = vadd.f32 %v1304, %v1378
        %v1380 = vpop.f32.mrf.mxu0
        %1381 = vdwg.mxu0
        %vm1382 = vcmask 523264
        %1383 = vst.msk [vmem:[%s293] sm:$0xff] %vm1382, %v1374
        %1384 = vst.msk [vmem:[%s293 + $0x8] sm:$0xff] %vm1382, %v1379
        %p1385 = scmp.lt.s32.totalorder %s19, 1
        %s1386 = scalar_select %p1385, %s19, 1
        %s1387 = smul.addr %s1386, 2
        %s1388 = smul.addr %s1387, 8
        %s1389 = scalar_lea.vmem %s7, %s1388
        // Predicated region
        $region53: #{a_call__.1} parent=47 // pred_check
          %p1390 = pneg %p189
        $region54: #{a_call__.1} parent=47 // pred_check_branch
          %1392 = sbr.rel (%p1390) target = $region56
        $region55: #{a_call__.1} parent=47 // pred_region
          _
        $region56: #{a_call__.1} parent=47 // pred_fallthru
          _
      $region48: #{a_call__.1} parent=5 // pred_fallthru
        _
      %p1393 = scmp.le.s32.totalorder 2, %s14
      // Predicated region
      $region57: #{a_call__.1} parent=5 // pred_check
        %p1394 = pneg %p1393
      $region58: #{a_call__.1} parent=5 // pred_check_branch
        %1396 = sbr.rel (%p1394) target = $region60
      $region59: #{a_call__.1} parent=5 // pred_region
        %s1397 = ssub.s32 %s14, 2
        // Predicated region
        $region61: #{a_call__.1} parent=59 // pred_check
          %p1398 = pneg %p195
        $region62: #{a_call__.1} parent=59 // pred_check_branch
          %1400 = sbr.rel (%p1398) target = $region64
        $region63: #{a_call__.1} parent=59 // pred_region
          %p1401 = scmp.lt.s32.totalorder %s20, 1
          %s1402 = scalar_select %p1401, %s20, 1
          %s1403 = smul.addr %s1402, 2
          %s1404 = smul.addr %s1403, 8
          %s1405 = scalar_lea.vmem %s7, %s1404
        $region64: #{a_call__.1} parent=59 // pred_fallthru
          _
      $region60: #{a_call__.1} parent=5 // pred_fallthru
        _
    $region6: #{a_call__.1} parent=1 // loop_footer
      %s18 = sadd.s32 1, %s14
    $region7: #{a_call__.1} parent=1 // loop_footer_branch
      %13 = sbr.rel target = $region3
    $region8: #{a_call__.1} parent=1 // loop_exit
      _
    %1406 = vsyncpa [#allocation3], 1
    %s1407 = scalar_lea.sflag [#allocation3], 1
    %1408 = vsyncpa %s1407, 1

</llo_original>
